<compile_context>
chip_gen: v7x
topology: tpu7x:2x2x1
jax: 0.10.0
libtpu: 0.0.40
codegen_flags: <defaults>
</compile_context>

<pallas_src>
import functools
import math

import jax
import jax.numpy as jnp
from jax import lax
from jax.experimental import pallas as pl
from jax.experimental.pallas import tpu as pltpu


def _bert_self_attention_kernel(x_ref, mask_ref, wq_ref, wkv_ref, bq_ref, bkv_ref,
                                o_ref, kv_scratch,
                                *, num_heads, head_size, hidden, q_tile,
                                heads_per_store, scale, compute_dtype):
    # x_ref:      (1, S, H)      full sequence for this batch element (bf16)
    # mask_ref:   (1, 1, S)      additive key mask (fp32)
    # wq_ref:     (H, H)         query weight (bf16)
    # wkv_ref:    (H, 2H)        fused [Wk | Wv] (bf16)
    # bq_ref:     (1, H)         query bias (fp32)
    # bkv_ref:    (1, 2H)        fused [bk | bv] (fp32)
    # o_ref:      (1, TQ, H)     output context tile
    # kv_scratch: (2, nh, S, d)  head-major cached K (idx 0) / V (idx 1), compute dtype
    qi = pl.program_id(1)

    # --- K/V projection over the full sequence: computed once per batch element
    #     (qi axis is sequential / "arbitrary"), cached head-major in VMEM. ---
    @pl.when(qi == 0)
    def _():
        x_full = x_ref[0]                                                  # (S, H) bf16
        kv = jnp.dot(x_full, wkv_ref[...],
                     preferred_element_type=jnp.float32)                   # (S, 2H) fp32
        kv = (kv + bkv_ref[...]).astype(compute_dtype)
        # One lane-dim relayout per batch element (instead of nh per query tile).
        for h in range(num_heads):
            lo = h * head_size
            kv_scratch[0, h] = kv[:, lo:lo + head_size]                     # K_h (S, d)
            kv_scratch[1, h] = kv[:, hidden + lo:hidden + lo + head_size]   # V_h (S, d)

    # --- Q projection for this query tile, read out of the resident x block. ---
    q_start = pl.multiple_of(qi * q_tile, q_tile)
    x_q = x_ref[0, pl.ds(q_start, q_tile), :]                               # (TQ, H) bf16
    q = jnp.dot(x_q, wq_ref[...], preferred_element_type=jnp.float32)       # (TQ, H) fp32
    q = ((q + bq_ref[...]) * scale).astype(compute_dtype)                   # bias+1/sqrt(d)

    # Hoisted out of the head loop (JAX does not CSE broadcasts).
    mask_row = mask_ref[0]                                                   # (1, S) fp32

    # Heads are processed in store-groups so every write into o_ref is a lane-dense,
    # 128-aligned slab (heads_per_store*d % 128 == 0 when head_size allows it).
    for g0 in range(0, num_heads, heads_per_store):
        parts = []
        for h in range(g0, g0 + heads_per_store):
            lo = h * head_size
            qh = q[:, lo:lo + head_size]                                     # (TQ, d)
            kh = kv_scratch[0, h]                                            # (S, d)
            vh = kv_scratch[1, h]                                            # (S, d)

            # scores = qh @ kh^T: contract the last axis of both operands
            # (no explicit K transpose materialized through the XLU).
            scores = lax.dot_general(qh, kh, (((1,), (1,)), ((), ())),
                                     preferred_element_type=jnp.float32)     # (TQ, S)
            scores = scores + mask_row

            # Numerically-stable softmax along keys (fp32); normalization is applied
            # AFTER the PV matmul on the (TQ, d) result (matmul is linear in probs).
            m = jnp.max(scores, axis=-1, keepdims=True)
            e = jnp.exp(scores - m)
            denom = jnp.sum(e, axis=-1, keepdims=True)

            # TODO(synk): attention-prob dropout omitted (eval mode / handled outside kernel).
            ctx = jnp.dot(e.astype(compute_dtype), vh,
                          preferred_element_type=jnp.float32)                # (TQ, d)
            parts.append(ctx * pl.reciprocal(denom, approx=True))

        group = parts[0] if len(parts) == 1 else jnp.concatenate(parts, axis=-1)
        lo = g0 * head_size
        hi = lo + heads_per_store * head_size
        # Direct, 128-aligned store into the output block (reproduces
        # permute(0,2,1,3).view(..., all_head_size) head re-concatenation).
        o_ref[0, :, lo:hi] = group.astype(o_ref.dtype)


def _ceil_to(x, m):
    return -(-x // m) * m


def _vmem_budget_bytes(S, H, TQ, nh, d, cdt_bytes, out_bytes):
    """Shape-derived scoped-VMEM budget: blocks (with buffer counts) + scratch + headroom."""
    x_blk = 1 * _ceil_to(S, 8) * _ceil_to(H, 128) * cdt_bytes          # Buffered(1)
    wq_blk = 1 * _ceil_to(H, 8) * _ceil_to(H, 128) * cdt_bytes         # Buffered(1)
    wkv_blk = 1 * _ceil_to(H, 8) * _ceil_to(2 * H, 128) * cdt_bytes    # Buffered(1)
    bq_blk = 1 * 8 * _ceil_to(H, 128) * 4                              # Buffered(1)
    bkv_blk = 1 * 8 * _ceil_to(2 * H, 128) * 4                         # Buffered(1)
    mask_blk = 2 * 8 * _ceil_to(S, 128) * 4                            # double-buffered
    out_blk = 2 * _ceil_to(TQ, 8) * _ceil_to(H, 128) * out_bytes       # double-buffered
    kv_scr = 2 * nh * _ceil_to(S, 8) * _ceil_to(d, 128) * cdt_bytes    # head-major cache
    total = x_blk + wq_blk + wkv_blk + bq_blk + bkv_blk + mask_blk + out_blk + kv_scr
    # +30% headroom for compiler scratch/spills; floor at 16 MiB (v5e scoped default),
    # cap at 96 MiB (v5e/v6e have 128 MiB physical; v7x configs must fit 64 MiB anyway).
    return min(max(int(total * 1.3), 16 * 1024 * 1024), 96 * 1024 * 1024)


def bert_self_attention(hidden_states, attention_mask, wq, wk, wv, bq, bk, bv,
                        *, num_attention_heads, q_tile=256,
                        compute_dtype=jnp.bfloat16):
    B, S, H = hidden_states.shape
    assert H % num_attention_heads == 0
    head_size = H // num_attention_heads

    TQ = min(q_tile, S)
    assert S % TQ == 0, "sequence length must be a multiple of the query tile"
    nq = S // TQ

    # Heads per store-group: smallest divisor of nh whose group width is a multiple of
    # 128 lanes (lane-dense unmasked stores); fall back to all heads (one full store).
    heads_per_store = num_attention_heads
    for g in range(1, num_attention_heads + 1):
        if num_attention_heads % g == 0 and (g * head_size) % 128 == 0:
            heads_per_store = g
            break

    # attention_mask arrives as [B, 1, 1, S]; squeeze to [B, 1, S] for a clean BlockSpec.
    mask3 = attention_mask.reshape(B, 1, S).astype(jnp.float32)

    # Cast MXU operands (activations + weights) to the compute dtype in HBM; fuse [Wk|Wv].
    x_c = hidden_states.astype(compute_dtype)
    wq_c = wq.astype(compute_dtype)
    wkv_c = jnp.concatenate([wk, wv], axis=1).astype(compute_dtype)
    bq2 = bq.reshape(1, H).astype(jnp.float32)
    bkv2 = jnp.concatenate([bk, bv]).reshape(1, 2 * H).astype(jnp.float32)

    kernel = functools.partial(
        _bert_self_attention_kernel,
        num_heads=num_attention_heads,
        head_size=head_size,
        hidden=H,
        q_tile=TQ,
        heads_per_store=heads_per_store,
        scale=1.0 / math.sqrt(head_size),
        compute_dtype=compute_dtype,
    )

    out_dtype = hidden_states.dtype
    vmem_limit = _vmem_budget_bytes(S, H, TQ, num_attention_heads, head_size,
                                    jnp.dtype(compute_dtype).itemsize,
                                    jnp.dtype(out_dtype).itemsize)

    def build(single_buffer_consts):
        def const_spec(shape, index_map):
            # Single-buffer the (grid-)constant blocks to halve their VMEM residency.
            if single_buffer_consts:
                return pl.BlockSpec(shape, index_map, pipeline_mode=pl.Buffered(1))
            return pl.BlockSpec(shape, index_map)

        return pl.pallas_call(
            kernel,
            out_shape=jax.ShapeDtypeStruct((B, S, H), out_dtype),
            grid=(B, nq),
            in_specs=[
                const_spec((1, S, H), lambda b, qi: (b, 0, 0)),      # full sequence
                pl.BlockSpec((1, 1, S), lambda b, qi: (b, 0, 0)),    # additive key mask
                const_spec((H, H), lambda b, qi: (0, 0)),            # Wq
                const_spec((H, 2 * H), lambda b, qi: (0, 0)),        # [Wk | Wv]
                const_spec((1, H), lambda b, qi: (0, 0)),            # bq
                const_spec((1, 2 * H), lambda b, qi: (0, 0)),        # [bk | bv]
            ],
            out_specs=pl.BlockSpec((1, TQ, H), lambda b, qi: (b, qi, 0)),
            scratch_shapes=[
                # Head-major cached K/V per batch element: free per-head leading-axis
                # selects in the head loop (lane dim d is padded to 128 internally).
                pltpu.VMEM((2, num_attention_heads, S, head_size), compute_dtype),
            ],
            compiler_params=pltpu.CompilerParams(
                # Batch axis sharded across TensorCores; query-tile axis is sequential so
                # the kv cache written at qi == 0 stays valid for the whole batch element.
                dimension_semantics=("parallel", "arbitrary"),
                vmem_limit_bytes=vmem_limit,
            ),
        )

    try:
        return build(True)(x_c, mask3, wq_c, wkv_c, bq2, bkv2)
    except Exception:
        # Portability guard only: older Pallas versions without per-spec pipeline_mode.
        return build(False)(x_c, mask3, wq_c, wkv_c, bq2, bkv2)


def _reference(hidden_states, attention_mask, wq, wk, wv, bq, bk, bv, num_heads):
    """Pure-JAX fp32 reference mirroring the torch module exactly (eval mode)."""
    B, S, H = hidden_states.shape
    d = H // num_heads

    def split_heads(x):  # (B, S, H) -> (B, nh, S, d)
        return x.reshape(B, S, num_heads, d).transpose(0, 2, 1, 3)

    q = split_heads(hidden_states @ wq + bq)
    k = split_heads(hidden_states @ wk + bk)
    v = split_heads(hidden_states @ wv + bv)

    scores = jnp.einsum("bhqd,bhkd->bhqk", q, k) / math.sqrt(d)
    scores = scores + attention_mask                       # (B,1,1,S) broadcast
    probs = jax.nn.softmax(scores, axis=-1)
    ctx = jnp.einsum("bhqk,bhkd->bhqd", probs, v)
    return ctx.transpose(0, 2, 1, 3).reshape(B, S, H)


if __name__ == "__main__":
    # config: hidden_size=32, num_attention_heads=4, seq=8, batch=2
    B, S, H, NH = 2, 8, 32, 4

    key = jax.random.PRNGKey(0)
    k_x, k_wq, k_wk, k_wv, k_bq, k_bk, k_bv, k_mask = jax.random.split(key, 8)

    hidden_states = jax.random.normal(k_x, (B, S, H), dtype=jnp.float32)

    # Deterministic synthetic parameters (BERT-style small-normal weights).
    wq = 0.02 * jax.random.normal(k_wq, (H, H), dtype=jnp.float32)
    wk = 0.02 * jax.random.normal(k_wk, (H, H), dtype=jnp.float32)
    wv = 0.02 * jax.random.normal(k_wv, (H, H), dtype=jnp.float32)
    bq = 0.01 * jax.random.normal(k_bq, (H,), dtype=jnp.float32)
    bk = 0.01 * jax.random.normal(k_bk, (H,), dtype=jnp.float32)
    bv = 0.01 * jax.random.normal(k_bv, (H,), dtype=jnp.float32)

    # Standard BERT additive attention mask: 0 for visible tokens, -10000 for padding.
    keep = (jax.random.uniform(k_mask, (B, S)) > 0.25).astype(jnp.float32)
    keep = keep.at[:, 0].set(1.0)  # keep at least the first token per batch
    attention_mask = ((1.0 - keep) * -10000.0).reshape(B, 1, 1, S)

    out = bert_self_attention(hidden_states, attention_mask, wq, wk, wv, bq, bk, bv,
                              num_attention_heads=NH)
    out = jax.block_until_ready(out)

    ref = _reference(hidden_states, attention_mask, wq, wk, wv, bq, bk, bv, NH)
    assert out.shape == (B, S, H)
    # Tolerance loosened for bf16 activations/MXU operands + approx reciprocal (fp32 softmax).
    assert jnp.allclose(out, ref, atol=2e-2, rtol=2e-2), "mismatch vs pure-JAX reference"

    print("KERNEL_OK")
</pallas_src>

<mosaic_0001>
module attributes {stable_mosaic.version = 11 : i64} {
  func.func @_bert_self_attention_kernel(%arg0: i32, %arg1: i32, %arg2: memref<1x8x32xbf16, #tpu.memory_space<vmem>>, %arg3: memref<1x1x8xf32, #tpu.memory_space<vmem>>, %arg4: memref<32x32xbf16, #tpu.memory_space<vmem>>, %arg5: memref<32x64xbf16, #tpu.memory_space<vmem>>, %arg6: memref<1x32xf32, #tpu.memory_space<vmem>>, %arg7: memref<1x64xf32, #tpu.memory_space<vmem>>, %arg8: memref<1x8x32xf32, #tpu.memory_space<vmem>>, %arg9: memref<2x4x8x8xbf16, #tpu.memory_space<vmem>>) attributes {dimension_semantics = [#tpu.dimension_semantics<parallel>, #tpu.dimension_semantics<arbitrary>], iteration_bounds = array<i64: 2, 1>, scalar_prefetch = 0 : i64, scratch_operands = 1 : i64, tpu.core_type = #tpu.core_type<tc>, window_params = [{pipeline_mode = #tpu.pipeline_mode<synchronous>, transform_indices = @transform_0, window_bounds = array<i64: 1, 8, 32>}, {transform_indices = @transform_1, window_bounds = array<i64: 1, 1, 8>}, {pipeline_mode = #tpu.pipeline_mode<synchronous>, transform_indices = @transform_2, window_bounds = array<i64: 32, 32>}, {pipeline_mode = #tpu.pipeline_mode<synchronous>, transform_indices = @transform_3, window_bounds = array<i64: 32, 64>}, {pipeline_mode = #tpu.pipeline_mode<synchronous>, transform_indices = @transform_4, window_bounds = array<i64: 1, 32>}, {pipeline_mode = #tpu.pipeline_mode<synchronous>, transform_indices = @transform_5, window_bounds = array<i64: 1, 64>}, {transform_indices = @transform_6, window_bounds = array<i64: 1, 8, 32>}]} {
    %c0_i32 = arith.constant 0 : i32
    %0 = arith.cmpi eq, %arg1, %c0_i32 : i32
    %1 = arith.extui %0 : i1 to i32
    %c0_i32_0 = arith.constant 0 : i32
    %2 = arith.cmpi ne, %1, %c0_i32_0 : i32
    scf.if %2 {
      %c0_58 = arith.constant 0 : index
      %c0_59 = arith.constant 0 : index
      %c0_60 = arith.constant 0 : index
      %102 = vector.load %arg2[%c0_58, %c0_59, %c0_60] : memref<1x8x32xbf16, #tpu.memory_space<vmem>>, vector<1x8x32xbf16>
      %103 = vector.shape_cast %102 : vector<1x8x32xbf16> to vector<8x32xbf16>
      %c0_61 = arith.constant 0 : index
      %c0_62 = arith.constant 0 : index
      %104 = vector.load %arg5[%c0_61, %c0_62] : memref<32x64xbf16, #tpu.memory_space<vmem>>, vector<32x64xbf16>
      %cst_63 = arith.constant dense<0.000000e+00> : vector<8x64xf32>
      %105 = tpu.matmul %103, %104, %cst_63 {dimension_numbers = #tpu.dot_dimension_numbers<[1], [0], [0], [1], [0, 0, 1, 1], [], []>} : vector<8x32xbf16>, vector<32x64xbf16>, vector<8x64xf32> -> vector<8x64xf32>
      %c0_64 = arith.constant 0 : index
      %c0_65 = arith.constant 0 : index
      %106 = vector.load %arg7[%c0_64, %c0_65] : memref<1x64xf32, #tpu.memory_space<vmem>>, vector<1x64xf32>
      %107 = vector.broadcast %106 : vector<1x64xf32> to vector<8x64xf32>
      %108 = arith.addf %105, %107 : vector<8x64xf32>
      %109 = arith.truncf %108 : vector<8x64xf32> to vector<8x64xbf16>
      %110 = vector.extract_strided_slice %109 {offsets = [0, 0], sizes = [8, 8], strides = [1, 1]} : vector<8x64xbf16> to vector<8x8xbf16>
      %c0_66 = arith.constant 0 : index
      %c0_67 = arith.constant 0 : index
      %c0_68 = arith.constant 0 : index
      %c0_69 = arith.constant 0 : index
      %111 = vector.load %arg9[%c0_66, %c0_67, %c0_68, %c0_69] : memref<2x4x8x8xbf16, #tpu.memory_space<vmem>>, vector<1x1x8x8xbf16>
      %112 = vector.shape_cast %111 : vector<1x1x8x8xbf16> to vector<8x8xbf16>
      %113 = vector.shape_cast %110 : vector<8x8xbf16> to vector<1x1x8x8xbf16>
      tpu.vector_store %arg9[%c0_66, %c0_67, %c0_68, %c0_69], %113 {strides = array<i32>} : memref<2x4x8x8xbf16, #tpu.memory_space<vmem>>, vector<1x1x8x8xbf16>,
      %114 = vector.extract_strided_slice %109 {offsets = [0, 32], sizes = [8, 8], strides = [1, 1]} : vector<8x64xbf16> to vector<8x8xbf16>
      %c1_70 = arith.constant 1 : index
      %c0_71 = arith.constant 0 : index
      %c0_72 = arith.constant 0 : index
      %c0_73 = arith.constant 0 : index
      %115 = vector.load %arg9[%c1_70, %c0_71, %c0_72, %c0_73] : memref<2x4x8x8xbf16, #tpu.memory_space<vmem>>, vector<1x1x8x8xbf16>
      %116 = vector.shape_cast %115 : vector<1x1x8x8xbf16> to vector<8x8xbf16>
      %117 = vector.shape_cast %114 : vector<8x8xbf16> to vector<1x1x8x8xbf16>
      tpu.vector_store %arg9[%c1_70, %c0_71, %c0_72, %c0_73], %117 {strides = array<i32>} : memref<2x4x8x8xbf16, #tpu.memory_space<vmem>>, vector<1x1x8x8xbf16>,
      %118 = vector.extract_strided_slice %109 {offsets = [0, 8], sizes = [8, 8], strides = [1, 1]} : vector<8x64xbf16> to vector<8x8xbf16>
      %c0_74 = arith.constant 0 : index
      %c1_75 = arith.constant 1 : index
      %c0_76 = arith.constant 0 : index
      %c0_77 = arith.constant 0 : index
      %119 = vector.load %arg9[%c0_74, %c1_75, %c0_76, %c0_77] : memref<2x4x8x8xbf16, #tpu.memory_space<vmem>>, vector<1x1x8x8xbf16>
      %120 = vector.shape_cast %119 : vector<1x1x8x8xbf16> to vector<8x8xbf16>
      %121 = vector.shape_cast %118 : vector<8x8xbf16> to vector<1x1x8x8xbf16>
      tpu.vector_store %arg9[%c0_74, %c1_75, %c0_76, %c0_77], %121 {strides = array<i32>} : memref<2x4x8x8xbf16, #tpu.memory_space<vmem>>, vector<1x1x8x8xbf16>,
      %122 = vector.extract_strided_slice %109 {offsets = [0, 40], sizes = [8, 8], strides = [1, 1]} : vector<8x64xbf16> to vector<8x8xbf16>
      %c1_78 = arith.constant 1 : index
      %c1_79 = arith.constant 1 : index
      %c0_80 = arith.constant 0 : index
      %c0_81 = arith.constant 0 : index
      %123 = vector.load %arg9[%c1_78, %c1_79, %c0_80, %c0_81] : memref<2x4x8x8xbf16, #tpu.memory_space<vmem>>, vector<1x1x8x8xbf16>
      %124 = vector.shape_cast %123 : vector<1x1x8x8xbf16> to vector<8x8xbf16>
      %125 = vector.shape_cast %122 : vector<8x8xbf16> to vector<1x1x8x8xbf16>
      tpu.vector_store %arg9[%c1_78, %c1_79, %c0_80, %c0_81], %125 {strides = array<i32>} : memref<2x4x8x8xbf16, #tpu.memory_space<vmem>>, vector<1x1x8x8xbf16>,
      %126 = vector.extract_strided_slice %109 {offsets = [0, 16], sizes = [8, 8], strides = [1, 1]} : vector<8x64xbf16> to vector<8x8xbf16>
      %c0_82 = arith.constant 0 : index
      %c2_83 = arith.constant 2 : index
      %c0_84 = arith.constant 0 : index
      %c0_85 = arith.constant 0 : index
      %127 = vector.load %arg9[%c0_82, %c2_83, %c0_84, %c0_85] : memref<2x4x8x8xbf16, #tpu.memory_space<vmem>>, vector<1x1x8x8xbf16>
      %128 = vector.shape_cast %127 : vector<1x1x8x8xbf16> to vector<8x8xbf16>
      %129 = vector.shape_cast %126 : vector<8x8xbf16> to vector<1x1x8x8xbf16>
      tpu.vector_store %arg9[%c0_82, %c2_83, %c0_84, %c0_85], %129 {strides = array<i32>} : memref<2x4x8x8xbf16, #tpu.memory_space<vmem>>, vector<1x1x8x8xbf16>,
      %130 = vector.extract_strided_slice %109 {offsets = [0, 48], sizes = [8, 8], strides = [1, 1]} : vector<8x64xbf16> to vector<8x8xbf16>
      %c1_86 = arith.constant 1 : index
      %c2_87 = arith.constant 2 : index
      %c0_88 = arith.constant 0 : index
      %c0_89 = arith.constant 0 : index
      %131 = vector.load %arg9[%c1_86, %c2_87, %c0_88, %c0_89] : memref<2x4x8x8xbf16, #tpu.memory_space<vmem>>, vector<1x1x8x8xbf16>
      %132 = vector.shape_cast %131 : vector<1x1x8x8xbf16> to vector<8x8xbf16>
      %133 = vector.shape_cast %130 : vector<8x8xbf16> to vector<1x1x8x8xbf16>
      tpu.vector_store %arg9[%c1_86, %c2_87, %c0_88, %c0_89], %133 {strides = array<i32>} : memref<2x4x8x8xbf16, #tpu.memory_space<vmem>>, vector<1x1x8x8xbf16>,
      %134 = vector.extract_strided_slice %109 {offsets = [0, 24], sizes = [8, 8], strides = [1, 1]} : vector<8x64xbf16> to vector<8x8xbf16>
      %c0_90 = arith.constant 0 : index
      %c3_91 = arith.constant 3 : index
      %c0_92 = arith.constant 0 : index
      %c0_93 = arith.constant 0 : index
      %135 = vector.load %arg9[%c0_90, %c3_91, %c0_92, %c0_93] : memref<2x4x8x8xbf16, #tpu.memory_space<vmem>>, vector<1x1x8x8xbf16>
      %136 = vector.shape_cast %135 : vector<1x1x8x8xbf16> to vector<8x8xbf16>
      %137 = vector.shape_cast %134 : vector<8x8xbf16> to vector<1x1x8x8xbf16>
      tpu.vector_store %arg9[%c0_90, %c3_91, %c0_92, %c0_93], %137 {strides = array<i32>} : memref<2x4x8x8xbf16, #tpu.memory_space<vmem>>, vector<1x1x8x8xbf16>,
      %138 = vector.extract_strided_slice %109 {offsets = [0, 56], sizes = [8, 8], strides = [1, 1]} : vector<8x64xbf16> to vector<8x8xbf16>
      %c1_94 = arith.constant 1 : index
      %c3_95 = arith.constant 3 : index
      %c0_96 = arith.constant 0 : index
      %c0_97 = arith.constant 0 : index
      %139 = vector.load %arg9[%c1_94, %c3_95, %c0_96, %c0_97] : memref<2x4x8x8xbf16, #tpu.memory_space<vmem>>, vector<1x1x8x8xbf16>
      %140 = vector.shape_cast %139 : vector<1x1x8x8xbf16> to vector<8x8xbf16>
      %141 = vector.shape_cast %138 : vector<8x8xbf16> to vector<1x1x8x8xbf16>
      tpu.vector_store %arg9[%c1_94, %c3_95, %c0_96, %c0_97], %141 {strides = array<i32>} : memref<2x4x8x8xbf16, #tpu.memory_space<vmem>>, vector<1x1x8x8xbf16>,
    } else {
    }
    %c8_i32 = arith.constant 8 : i32
    %3 = arith.muli %arg1, %c8_i32 : i32
    %4 = tpu.assume_multiple %3, 8 : i32
    %c0 = arith.constant 0 : index
    %5 = arith.index_cast %4 : i32 to index
    %c0_1 = arith.constant 0 : index
    %6 = vector.load %arg2[%c0, %5, %c0_1] : memref<1x8x32xbf16, #tpu.memory_space<vmem>>, vector<1x8x32xbf16>
    %7 = vector.shape_cast %6 : vector<1x8x32xbf16> to vector<8x32xbf16>
    %c0_2 = arith.constant 0 : index
    %c0_3 = arith.constant 0 : index
    %8 = vector.load %arg4[%c0_2, %c0_3] : memref<32x32xbf16, #tpu.memory_space<vmem>>, vector<32x32xbf16>
    %cst = arith.constant dense<0.000000e+00> : vector<8x32xf32>
    %9 = tpu.matmul %7, %8, %cst {dimension_numbers = #tpu.dot_dimension_numbers<[1], [0], [0], [1], [0, 0, 1, 1], [], []>} : vector<8x32xbf16>, vector<32x32xbf16>, vector<8x32xf32> -> vector<8x32xf32>
    %c0_4 = arith.constant 0 : index
    %c0_5 = arith.constant 0 : index
    %10 = vector.load %arg6[%c0_4, %c0_5] : memref<1x32xf32, #tpu.memory_space<vmem>>, vector<1x32xf32>
    %11 = vector.broadcast %10 : vector<1x32xf32> to vector<8x32xf32>
    %12 = arith.addf %9, %11 : vector<8x32xf32>
    %cst_6 = arith.constant 0.353553385 : f32
    %13 = vector.broadcast %cst_6 : f32 to vector<8x32xf32>
    %14 = arith.mulf %12, %13 : vector<8x32xf32>
    %15 = arith.truncf %14 : vector<8x32xf32> to vector<8x32xbf16>
    %c0_7 = arith.constant 0 : index
    %c0_8 = arith.constant 0 : index
    %c0_9 = arith.constant 0 : index
    %16 = vector.load %arg3[%c0_7, %c0_8, %c0_9] : memref<1x1x8xf32, #tpu.memory_space<vmem>>, vector<1x1x8xf32>
    %17 = vector.shape_cast %16 : vector<1x1x8xf32> to vector<1x8xf32>
    %18 = vector.extract_strided_slice %15 {offsets = [0, 0], sizes = [8, 8], strides = [1, 1]} : vector<8x32xbf16> to vector<8x8xbf16>
    %c0_10 = arith.constant 0 : index
    %c0_11 = arith.constant 0 : index
    %c0_12 = arith.constant 0 : index
    %c0_13 = arith.constant 0 : index
    %19 = vector.load %arg9[%c0_10, %c0_11, %c0_12, %c0_13] : memref<2x4x8x8xbf16, #tpu.memory_space<vmem>>, vector<1x1x8x8xbf16>
    %20 = vector.shape_cast %19 : vector<1x1x8x8xbf16> to vector<8x8xbf16>
    %c1 = arith.constant 1 : index
    %c0_14 = arith.constant 0 : index
    %c0_15 = arith.constant 0 : index
    %c0_16 = arith.constant 0 : index
    %21 = vector.load %arg9[%c1, %c0_14, %c0_15, %c0_16] : memref<2x4x8x8xbf16, #tpu.memory_space<vmem>>, vector<1x1x8x8xbf16>
    %22 = vector.shape_cast %21 : vector<1x1x8x8xbf16> to vector<8x8xbf16>
    %cst_17 = arith.constant dense<0.000000e+00> : vector<8x8xf32>
    %23 = tpu.matmul %18, %20, %cst_17 {dimension_numbers = #tpu.dot_dimension_numbers<[1], [1], [0], [0], [0, 0, 1, 0], [], []>} : vector<8x8xbf16>, vector<8x8xbf16>, vector<8x8xf32> -> vector<8x8xf32>
    %24 = vector.broadcast %17 : vector<1x8xf32> to vector<8x8xf32>
    %25 = arith.addf %23, %24 : vector<8x8xf32>
    %cst_18 = arith.constant dense<0xFF800000> : vector<8xf32>
    %26 = vector.multi_reduction <maximumf>, %25, %cst_18 [1] : vector<8x8xf32> to vector<8xf32>
    %27 = vector.shape_cast %26 : vector<8xf32> to vector<8x1xf32>
    %28 = vector.broadcast %27 : vector<8x1xf32> to vector<8x8xf32>
    %29 = arith.subf %25, %28 : vector<8x8xf32>
    %30 = math.exp %29 : vector<8x8xf32>
    %cst_19 = arith.constant dense<0.000000e+00> : vector<8xf32>
    %31 = vector.multi_reduction <add>, %30, %cst_19 [1] : vector<8x8xf32> to vector<8xf32>
    %32 = vector.shape_cast %31 : vector<8xf32> to vector<8x1xf32>
    %33 = arith.truncf %30 : vector<8x8xf32> to vector<8x8xbf16>
    %cst_20 = arith.constant dense<0.000000e+00> : vector<8x8xf32>
    %34 = tpu.matmul %33, %22, %cst_20 {dimension_numbers = #tpu.dot_dimension_numbers<[1], [0], [0], [1], [0, 0, 1, 1], [], []>} : vector<8x8xbf16>, vector<8x8xbf16>, vector<8x8xf32> -> vector<8x8xf32>
    %35 = tpu.reciprocal %32 {approx = true} : vector<8x1xf32> -> vector<8x1xf32>
    %36 = vector.broadcast %35 : vector<8x1xf32> to vector<8x8xf32>
    %37 = arith.mulf %34, %36 : vector<8x8xf32>
    %38 = vector.extract_strided_slice %15 {offsets = [0, 8], sizes = [8, 8], strides = [1, 1]} : vector<8x32xbf16> to vector<8x8xbf16>
    %c0_21 = arith.constant 0 : index
    %c1_22 = arith.constant 1 : index
    %c0_23 = arith.constant 0 : index
    %c0_24 = arith.constant 0 : index
    %39 = vector.load %arg9[%c0_21, %c1_22, %c0_23, %c0_24] : memref<2x4x8x8xbf16, #tpu.memory_space<vmem>>, vector<1x1x8x8xbf16>
    %40 = vector.shape_cast %39 : vector<1x1x8x8xbf16> to vector<8x8xbf16>
    %c1_25 = arith.constant 1 : index
    %c1_26 = arith.constant 1 : index
    %c0_27 = arith.constant 0 : index
    %c0_28 = arith.constant 0 : index
    %41 = vector.load %arg9[%c1_25, %c1_26, %c0_27, %c0_28] : memref<2x4x8x8xbf16, #tpu.memory_space<vmem>>, vector<1x1x8x8xbf16>
    %42 = vector.shape_cast %41 : vector<1x1x8x8xbf16> to vector<8x8xbf16>
    %cst_29 = arith.constant dense<0.000000e+00> : vector<8x8xf32>
    %43 = tpu.matmul %38, %40, %cst_29 {dimension_numbers = #tpu.dot_dimension_numbers<[1], [1], [0], [0], [0, 0, 1, 0], [], []>} : vector<8x8xbf16>, vector<8x8xbf16>, vector<8x8xf32> -> vector<8x8xf32>
    %44 = vector.broadcast %17 : vector<1x8xf32> to vector<8x8xf32>
    %45 = arith.addf %43, %44 : vector<8x8xf32>
    %cst_30 = arith.constant dense<0xFF800000> : vector<8xf32>
    %46 = vector.multi_reduction <maximumf>, %45, %cst_30 [1] : vector<8x8xf32> to vector<8xf32>
    %47 = vector.shape_cast %46 : vector<8xf32> to vector<8x1xf32>
    %48 = vector.broadcast %47 : vector<8x1xf32> to vector<8x8xf32>
    %49 = arith.subf %45, %48 : vector<8x8xf32>
    %50 = math.exp %49 : vector<8x8xf32>
    %cst_31 = arith.constant dense<0.000000e+00> : vector<8xf32>
    %51 = vector.multi_reduction <add>, %50, %cst_31 [1] : vector<8x8xf32> to vector<8xf32>
    %52 = vector.shape_cast %51 : vector<8xf32> to vector<8x1xf32>
    %53 = arith.truncf %50 : vector<8x8xf32> to vector<8x8xbf16>
    %cst_32 = arith.constant dense<0.000000e+00> : vector<8x8xf32>
    %54 = tpu.matmul %53, %42, %cst_32 {dimension_numbers = #tpu.dot_dimension_numbers<[1], [0], [0], [1], [0, 0, 1, 1], [], []>} : vector<8x8xbf16>, vector<8x8xbf16>, vector<8x8xf32> -> vector<8x8xf32>
    %55 = tpu.reciprocal %52 {approx = true} : vector<8x1xf32> -> vector<8x1xf32>
    %56 = vector.broadcast %55 : vector<8x1xf32> to vector<8x8xf32>
    %57 = arith.mulf %54, %56 : vector<8x8xf32>
    %58 = vector.extract_strided_slice %15 {offsets = [0, 16], sizes = [8, 8], strides = [1, 1]} : vector<8x32xbf16> to vector<8x8xbf16>
    %c0_33 = arith.constant 0 : index
    %c2 = arith.constant 2 : index
    %c0_34 = arith.constant 0 : index
    %c0_35 = arith.constant 0 : index
    %59 = vector.load %arg9[%c0_33, %c2, %c0_34, %c0_35] : memref<2x4x8x8xbf16, #tpu.memory_space<vmem>>, vector<1x1x8x8xbf16>
    %60 = vector.shape_cast %59 : vector<1x1x8x8xbf16> to vector<8x8xbf16>
    %c1_36 = arith.constant 1 : index
    %c2_37 = arith.constant 2 : index
    %c0_38 = arith.constant 0 : index
    %c0_39 = arith.constant 0 : index
    %61 = vector.load %arg9[%c1_36, %c2_37, %c0_38, %c0_39] : memref<2x4x8x8xbf16, #tpu.memory_space<vmem>>, vector<1x1x8x8xbf16>
    %62 = vector.shape_cast %61 : vector<1x1x8x8xbf16> to vector<8x8xbf16>
    %cst_40 = arith.constant dense<0.000000e+00> : vector<8x8xf32>
    %63 = tpu.matmul %58, %60, %cst_40 {dimension_numbers = #tpu.dot_dimension_numbers<[1], [1], [0], [0], [0, 0, 1, 0], [], []>} : vector<8x8xbf16>, vector<8x8xbf16>, vector<8x8xf32> -> vector<8x8xf32>
    %64 = vector.broadcast %17 : vector<1x8xf32> to vector<8x8xf32>
    %65 = arith.addf %63, %64 : vector<8x8xf32>
    %cst_41 = arith.constant dense<0xFF800000> : vector<8xf32>
    %66 = vector.multi_reduction <maximumf>, %65, %cst_41 [1] : vector<8x8xf32> to vector<8xf32>
    %67 = vector.shape_cast %66 : vector<8xf32> to vector<8x1xf32>
    %68 = vector.broadcast %67 : vector<8x1xf32> to vector<8x8xf32>
    %69 = arith.subf %65, %68 : vector<8x8xf32>
    %70 = math.exp %69 : vector<8x8xf32>
    %cst_42 = arith.constant dense<0.000000e+00> : vector<8xf32>
    %71 = vector.multi_reduction <add>, %70, %cst_42 [1] : vector<8x8xf32> to vector<8xf32>
    %72 = vector.shape_cast %71 : vector<8xf32> to vector<8x1xf32>
    %73 = arith.truncf %70 : vector<8x8xf32> to vector<8x8xbf16>
    %cst_43 = arith.constant dense<0.000000e+00> : vector<8x8xf32>
    %74 = tpu.matmul %73, %62, %cst_43 {dimension_numbers = #tpu.dot_dimension_numbers<[1], [0], [0], [1], [0, 0, 1, 1], [], []>} : vector<8x8xbf16>, vector<8x8xbf16>, vector<8x8xf32> -> vector<8x8xf32>
    %75 = tpu.reciprocal %72 {approx = true} : vector<8x1xf32> -> vector<8x1xf32>
    %76 = vector.broadcast %75 : vector<8x1xf32> to vector<8x8xf32>
    %77 = arith.mulf %74, %76 : vector<8x8xf32>
    %78 = vector.extract_strided_slice %15 {offsets = [0, 24], sizes = [8, 8], strides = [1, 1]} : vector<8x32xbf16> to vector<8x8xbf16>
    %c0_44 = arith.constant 0 : index
    %c3 = arith.constant 3 : index
    %c0_45 = arith.constant 0 : index
    %c0_46 = arith.constant 0 : index
    %79 = vector.load %arg9[%c0_44, %c3, %c0_45, %c0_46] : memref<2x4x8x8xbf16, #tpu.memory_space<vmem>>, vector<1x1x8x8xbf16>
    %80 = vector.shape_cast %79 : vector<1x1x8x8xbf16> to vector<8x8xbf16>
    %c1_47 = arith.constant 1 : index
    %c3_48 = arith.constant 3 : index
    %c0_49 = arith.constant 0 : index
    %c0_50 = arith.constant 0 : index
    %81 = vector.load %arg9[%c1_47, %c3_48, %c0_49, %c0_50] : memref<2x4x8x8xbf16, #tpu.memory_space<vmem>>, vector<1x1x8x8xbf16>
    %82 = vector.shape_cast %81 : vector<1x1x8x8xbf16> to vector<8x8xbf16>
    %cst_51 = arith.constant dense<0.000000e+00> : vector<8x8xf32>
    %83 = tpu.matmul %78, %80, %cst_51 {dimension_numbers = #tpu.dot_dimension_numbers<[1], [1], [0], [0], [0, 0, 1, 0], [], []>} : vector<8x8xbf16>, vector<8x8xbf16>, vector<8x8xf32> -> vector<8x8xf32>
    %84 = vector.broadcast %17 : vector<1x8xf32> to vector<8x8xf32>
    %85 = arith.addf %83, %84 : vector<8x8xf32>
    %cst_52 = arith.constant dense<0xFF800000> : vector<8xf32>
    %86 = vector.multi_reduction <maximumf>, %85, %cst_52 [1] : vector<8x8xf32> to vector<8xf32>
    %87 = vector.shape_cast %86 : vector<8xf32> to vector<8x1xf32>
    %88 = vector.broadcast %87 : vector<8x1xf32> to vector<8x8xf32>
    %89 = arith.subf %85, %88 : vector<8x8xf32>
    %90 = math.exp %89 : vector<8x8xf32>
    %cst_53 = arith.constant dense<0.000000e+00> : vector<8xf32>
    %91 = vector.multi_reduction <add>, %90, %cst_53 [1] : vector<8x8xf32> to vector<8xf32>
    %92 = vector.shape_cast %91 : vector<8xf32> to vector<8x1xf32>
    %93 = arith.truncf %90 : vector<8x8xf32> to vector<8x8xbf16>
    %cst_54 = arith.constant dense<0.000000e+00> : vector<8x8xf32>
    %94 = tpu.matmul %93, %82, %cst_54 {dimension_numbers = #tpu.dot_dimension_numbers<[1], [0], [0], [1], [0, 0, 1, 1], [], []>} : vector<8x8xbf16>, vector<8x8xbf16>, vector<8x8xf32> -> vector<8x8xf32>
    %95 = tpu.reciprocal %92 {approx = true} : vector<8x1xf32> -> vector<8x1xf32>
    %96 = vector.broadcast %95 : vector<8x1xf32> to vector<8x8xf32>
    %97 = arith.mulf %94, %96 : vector<8x8xf32>
    %98 = tpu.concatenate %37, %57, %77, %97 in 1 : vector<8x8xf32>, vector<8x8xf32>, vector<8x8xf32>, vector<8x8xf32> -> vector<8x32xf32>
    %c0_55 = arith.constant 0 : index
    %c0_56 = arith.constant 0 : index
    %c0_57 = arith.constant 0 : index
    %99 = vector.load %arg8[%c0_55, %c0_56, %c0_57] : memref<1x8x32xf32, #tpu.memory_space<vmem>>, vector<1x8x32xf32>
    %100 = vector.shape_cast %99 : vector<1x8x32xf32> to vector<8x32xf32>
    %101 = vector.shape_cast %98 : vector<8x32xf32> to vector<1x8x32xf32>
    tpu.vector_store %arg8[%c0_55, %c0_56, %c0_57], %101 {strides = array<i32>} : memref<1x8x32xf32, #tpu.memory_space<vmem>>, vector<1x8x32xf32>,
    return
  }
  func.func @transform_0(%arg0: i32, %arg1: i32) -> (i32, i32, i32) {
    %c0_i32 = arith.constant 0 : i32
    %c0_i32_0 = arith.constant 0 : i32
    %c0_i32_1 = arith.constant 0 : i32
    return %arg0, %c0_i32, %c0_i32_0 : i32, i32, i32
  }
  func.func @transform_1(%arg0: i32, %arg1: i32) -> (i32, i32, i32) {
    %c0_i32 = arith.constant 0 : i32
    %c0_i32_0 = arith.constant 0 : i32
    %c0_i32_1 = arith.constant 0 : i32
    return %arg0, %c0_i32, %c0_i32_0 : i32, i32, i32
  }
  func.func @transform_2(%arg0: i32, %arg1: i32) -> (i32, i32) {
    %c0_i32 = arith.constant 0 : i32
    %c0_i32_0 = arith.constant 0 : i32
    %c0_i32_1 = arith.constant 0 : i32
    return %c0_i32, %c0_i32_0 : i32, i32
  }
  func.func @transform_3(%arg0: i32, %arg1: i32) -> (i32, i32) {
    %c0_i32 = arith.constant 0 : i32
    %c0_i32_0 = arith.constant 0 : i32
    %c0_i32_1 = arith.constant 0 : i32
    return %c0_i32, %c0_i32_0 : i32, i32
  }
  func.func @transform_4(%arg0: i32, %arg1: i32) -> (i32, i32) {
    %c0_i32 = arith.constant 0 : i32
    %c0_i32_0 = arith.constant 0 : i32
    %c0_i32_1 = arith.constant 0 : i32
    return %c0_i32, %c0_i32_0 : i32, i32
  }
  func.func @transform_5(%arg0: i32, %arg1: i32) -> (i32, i32) {
    %c0_i32 = arith.constant 0 : i32
    %c0_i32_0 = arith.constant 0 : i32
    %c0_i32_1 = arith.constant 0 : i32
    return %c0_i32, %c0_i32_0 : i32, i32
  }
  func.func @transform_6(%arg0: i32, %arg1: i32) -> (i32, i32, i32) {
    %c0_i32 = arith.constant 0 : i32
    %c0_i32_0 = arith.constant 0 : i32
    return %arg0, %arg1, %c0_i32 : i32, i32, i32
  }
}

module attributes {stable_mosaic.version = 11 : i64} {
  func.func @_bert_self_attention_kernel(%arg0: i32, %arg1: i32, %arg2: memref<1x8x32xbf16, #tpu.memory_space<vmem>>, %arg3: memref<1x1x8xf32, #tpu.memory_space<vmem>>, %arg4: memref<32x32xbf16, #tpu.memory_space<vmem>>, %arg5: memref<32x64xbf16, #tpu.memory_space<vmem>>, %arg6: memref<1x32xf32, #tpu.memory_space<vmem>>, %arg7: memref<1x64xf32, #tpu.memory_space<vmem>>, %arg8: memref<1x8x32xf32, #tpu.memory_space<vmem>>, %arg9: memref<2x4x8x8xbf16, #tpu.memory_space<vmem>>) attributes {dimension_semantics = [#tpu.dimension_semantics<parallel>, #tpu.dimension_semantics<arbitrary>], iteration_bounds = array<i64: 2, 1>, scalar_prefetch = 0 : i64, scratch_operands = 1 : i64, tpu.core_type = #tpu.core_type<tc>, window_params = [{transform_indices = @transform_0, window_bounds = array<i64: 1, 8, 32>}, {transform_indices = @transform_1, window_bounds = array<i64: 1, 1, 8>}, {pipeline_mode = #tpu.pipeline_mode<synchronous>, transform_indices = @transform_2, window_bounds = array<i64: 32, 32>}, {pipeline_mode = #tpu.pipeline_mode<synchronous>, transform_indices = @transform_3, window_bounds = array<i64: 32, 64>}, {pipeline_mode = #tpu.pipeline_mode<synchronous>, transform_indices = @transform_4, window_bounds = array<i64: 1, 32>}, {pipeline_mode = #tpu.pipeline_mode<synchronous>, transform_indices = @transform_5, window_bounds = array<i64: 1, 64>}, {transform_indices = @transform_6, window_bounds = array<i64: 1, 8, 32>}]} {
    %c0_i32 = arith.constant 0 : i32
    %0 = arith.cmpi eq, %arg1, %c0_i32 : i32
    %1 = arith.extui %0 : i1 to i32
    %c0_i32_0 = arith.constant 0 : i32
    %2 = arith.cmpi ne, %1, %c0_i32_0 : i32
    scf.if %2 {
      %c0_58 = arith.constant 0 : index
      %c0_59 = arith.constant 0 : index
      %c0_60 = arith.constant 0 : index
      %102 = vector.load %arg2[%c0_58, %c0_59, %c0_60] : memref<1x8x32xbf16, #tpu.memory_space<vmem>>, vector<1x8x32xbf16>
      %103 = vector.shape_cast %102 : vector<1x8x32xbf16> to vector<8x32xbf16>
      %c0_61 = arith.constant 0 : index
      %c0_62 = arith.constant 0 : index
      %104 = vector.load %arg5[%c0_61, %c0_62] : memref<32x64xbf16, #tpu.memory_space<vmem>>, vector<32x64xbf16>
      %cst_63 = arith.constant dense<0.000000e+00> : vector<8x64xf32>
      %105 = tpu.matmul %103, %104, %cst_63 {dimension_numbers = #tpu.dot_dimension_numbers<[1], [0], [0], [1], [0, 0, 1, 1], [], []>} : vector<8x32xbf16>, vector<32x64xbf16>, vector<8x64xf32> -> vector<8x64xf32>
      %c0_64 = arith.constant 0 : index
      %c0_65 = arith.constant 0 : index
      %106 = vector.load %arg7[%c0_64, %c0_65] : memref<1x64xf32, #tpu.memory_space<vmem>>, vector<1x64xf32>
      %107 = vector.broadcast %106 : vector<1x64xf32> to vector<8x64xf32>
      %108 = arith.addf %105, %107 : vector<8x64xf32>
      %109 = arith.truncf %108 : vector<8x64xf32> to vector<8x64xbf16>
      %110 = vector.extract_strided_slice %109 {offsets = [0, 0], sizes = [8, 8], strides = [1, 1]} : vector<8x64xbf16> to vector<8x8xbf16>
      %c0_66 = arith.constant 0 : index
      %c0_67 = arith.constant 0 : index
      %c0_68 = arith.constant 0 : index
      %c0_69 = arith.constant 0 : index
      %111 = vector.load %arg9[%c0_66, %c0_67, %c0_68, %c0_69] : memref<2x4x8x8xbf16, #tpu.memory_space<vmem>>, vector<1x1x8x8xbf16>
      %112 = vector.shape_cast %111 : vector<1x1x8x8xbf16> to vector<8x8xbf16>
      %113 = vector.shape_cast %110 : vector<8x8xbf16> to vector<1x1x8x8xbf16>
      tpu.vector_store %arg9[%c0_66, %c0_67, %c0_68, %c0_69], %113 {strides = array<i32>} : memref<2x4x8x8xbf16, #tpu.memory_space<vmem>>, vector<1x1x8x8xbf16>,
      %114 = vector.extract_strided_slice %109 {offsets = [0, 32], sizes = [8, 8], strides = [1, 1]} : vector<8x64xbf16> to vector<8x8xbf16>
      %c1_70 = arith.constant 1 : index
      %c0_71 = arith.constant 0 : index
      %c0_72 = arith.constant 0 : index
      %c0_73 = arith.constant 0 : index
      %115 = vector.load %arg9[%c1_70, %c0_71, %c0_72, %c0_73] : memref<2x4x8x8xbf16, #tpu.memory_space<vmem>>, vector<1x1x8x8xbf16>
      %116 = vector.shape_cast %115 : vector<1x1x8x8xbf16> to vector<8x8xbf16>
      %117 = vector.shape_cast %114 : vector<8x8xbf16> to vector<1x1x8x8xbf16>
      tpu.vector_store %arg9[%c1_70, %c0_71, %c0_72, %c0_73], %117 {strides = array<i32>} : memref<2x4x8x8xbf16, #tpu.memory_space<vmem>>, vector<1x1x8x8xbf16>,
      %118 = vector.extract_strided_slice %109 {offsets = [0, 8], sizes = [8, 8], strides = [1, 1]} : vector<8x64xbf16> to vector<8x8xbf16>
      %c0_74 = arith.constant 0 : index
      %c1_75 = arith.constant 1 : index
      %c0_76 = arith.constant 0 : index
      %c0_77 = arith.constant 0 : index
      %119 = vector.load %arg9[%c0_74, %c1_75, %c0_76, %c0_77] : memref<2x4x8x8xbf16, #tpu.memory_space<vmem>>, vector<1x1x8x8xbf16>
      %120 = vector.shape_cast %119 : vector<1x1x8x8xbf16> to vector<8x8xbf16>
      %121 = vector.shape_cast %118 : vector<8x8xbf16> to vector<1x1x8x8xbf16>
      tpu.vector_store %arg9[%c0_74, %c1_75, %c0_76, %c0_77], %121 {strides = array<i32>} : memref<2x4x8x8xbf16, #tpu.memory_space<vmem>>, vector<1x1x8x8xbf16>,
      %122 = vector.extract_strided_slice %109 {offsets = [0, 40], sizes = [8, 8], strides = [1, 1]} : vector<8x64xbf16> to vector<8x8xbf16>
      %c1_78 = arith.constant 1 : index
      %c1_79 = arith.constant 1 : index
      %c0_80 = arith.constant 0 : index
      %c0_81 = arith.constant 0 : index
      %123 = vector.load %arg9[%c1_78, %c1_79, %c0_80, %c0_81] : memref<2x4x8x8xbf16, #tpu.memory_space<vmem>>, vector<1x1x8x8xbf16>
      %124 = vector.shape_cast %123 : vector<1x1x8x8xbf16> to vector<8x8xbf16>
      %125 = vector.shape_cast %122 : vector<8x8xbf16> to vector<1x1x8x8xbf16>
      tpu.vector_store %arg9[%c1_78, %c1_79, %c0_80, %c0_81], %125 {strides = array<i32>} : memref<2x4x8x8xbf16, #tpu.memory_space<vmem>>, vector<1x1x8x8xbf16>,
      %126 = vector.extract_strided_slice %109 {offsets = [0, 16], sizes = [8, 8], strides = [1, 1]} : vector<8x64xbf16> to vector<8x8xbf16>
      %c0_82 = arith.constant 0 : index
      %c2_83 = arith.constant 2 : index
      %c0_84 = arith.constant 0 : index
      %c0_85 = arith.constant 0 : index
      %127 = vector.load %arg9[%c0_82, %c2_83, %c0_84, %c0_85] : memref<2x4x8x8xbf16, #tpu.memory_space<vmem>>, vector<1x1x8x8xbf16>
      %128 = vector.shape_cast %127 : vector<1x1x8x8xbf16> to vector<8x8xbf16>
      %129 = vector.shape_cast %126 : vector<8x8xbf16> to vector<1x1x8x8xbf16>
      tpu.vector_store %arg9[%c0_82, %c2_83, %c0_84, %c0_85], %129 {strides = array<i32>} : memref<2x4x8x8xbf16, #tpu.memory_space<vmem>>, vector<1x1x8x8xbf16>,
      %130 = vector.extract_strided_slice %109 {offsets = [0, 48], sizes = [8, 8], strides = [1, 1]} : vector<8x64xbf16> to vector<8x8xbf16>
      %c1_86 = arith.constant 1 : index
      %c2_87 = arith.constant 2 : index
      %c0_88 = arith.constant 0 : index
      %c0_89 = arith.constant 0 : index
      %131 = vector.load %arg9[%c1_86, %c2_87, %c0_88, %c0_89] : memref<2x4x8x8xbf16, #tpu.memory_space<vmem>>, vector<1x1x8x8xbf16>
      %132 = vector.shape_cast %131 : vector<1x1x8x8xbf16> to vector<8x8xbf16>
      %133 = vector.shape_cast %130 : vector<8x8xbf16> to vector<1x1x8x8xbf16>
      tpu.vector_store %arg9[%c1_86, %c2_87, %c0_88, %c0_89], %133 {strides = array<i32>} : memref<2x4x8x8xbf16, #tpu.memory_space<vmem>>, vector<1x1x8x8xbf16>,
      %134 = vector.extract_strided_slice %109 {offsets = [0, 24], sizes = [8, 8], strides = [1, 1]} : vector<8x64xbf16> to vector<8x8xbf16>
      %c0_90 = arith.constant 0 : index
      %c3_91 = arith.constant 3 : index
      %c0_92 = arith.constant 0 : index
      %c0_93 = arith.constant 0 : index
      %135 = vector.load %arg9[%c0_90, %c3_91, %c0_92, %c0_93] : memref<2x4x8x8xbf16, #tpu.memory_space<vmem>>, vector<1x1x8x8xbf16>
      %136 = vector.shape_cast %135 : vector<1x1x8x8xbf16> to vector<8x8xbf16>
      %137 = vector.shape_cast %134 : vector<8x8xbf16> to vector<1x1x8x8xbf16>
      tpu.vector_store %arg9[%c0_90, %c3_91, %c0_92, %c0_93], %137 {strides = array<i32>} : memref<2x4x8x8xbf16, #tpu.memory_space<vmem>>, vector<1x1x8x8xbf16>,
      %138 = vector.extract_strided_slice %109 {offsets = [0, 56], sizes = [8, 8], strides = [1, 1]} : vector<8x64xbf16> to vector<8x8xbf16>
      %c1_94 = arith.constant 1 : index
      %c3_95 = arith.constant 3 : index
      %c0_96 = arith.constant 0 : index
      %c0_97 = arith.constant 0 : index
      %139 = vector.load %arg9[%c1_94, %c3_95, %c0_96, %c0_97] : memref<2x4x8x8xbf16, #tpu.memory_space<vmem>>, vector<1x1x8x8xbf16>
      %140 = vector.shape_cast %139 : vector<1x1x8x8xbf16> to vector<8x8xbf16>
      %141 = vector.shape_cast %138 : vector<8x8xbf16> to vector<1x1x8x8xbf16>
      tpu.vector_store %arg9[%c1_94, %c3_95, %c0_96, %c0_97], %141 {strides = array<i32>} : memref<2x4x8x8xbf16, #tpu.memory_space<vmem>>, vector<1x1x8x8xbf16>,
    } else {
    }
    %c8_i32 = arith.constant 8 : i32
    %3 = arith.muli %arg1, %c8_i32 : i32
    %4 = tpu.assume_multiple %3, 8 : i32
    %c0 = arith.constant 0 : index
    %5 = arith.index_cast %4 : i32 to index
    %c0_1 = arith.constant 0 : index
    %6 = vector.load %arg2[%c0, %5, %c0_1] : memref<1x8x32xbf16, #tpu.memory_space<vmem>>, vector<1x8x32xbf16>
    %7 = vector.shape_cast %6 : vector<1x8x32xbf16> to vector<8x32xbf16>
    %c0_2 = arith.constant 0 : index
    %c0_3 = arith.constant 0 : index
    %8 = vector.load %arg4[%c0_2, %c0_3] : memref<32x32xbf16, #tpu.memory_space<vmem>>, vector<32x32xbf16>
    %cst = arith.constant dense<0.000000e+00> : vector<8x32xf32>
    %9 = tpu.matmul %7, %8, %cst {dimension_numbers = #tpu.dot_dimension_numbers<[1], [0], [0], [1], [0, 0, 1, 1], [], []>} : vector<8x32xbf16>, vector<32x32xbf16>, vector<8x32xf32> -> vector<8x32xf32>
    %c0_4 = arith.constant 0 : index
    %c0_5 = arith.constant 0 : index
    %10 = vector.load %arg6[%c0_4, %c0_5] : memref<1x32xf32, #tpu.memory_space<vmem>>, vector<1x32xf32>
    %11 = vector.broadcast %10 : vector<1x32xf32> to vector<8x32xf32>
    %12 = arith.addf %9, %11 : vector<8x32xf32>
    %cst_6 = arith.constant 0.353553385 : f32
    %13 = vector.broadcast %cst_6 : f32 to vector<8x32xf32>
    %14 = arith.mulf %12, %13 : vector<8x32xf32>
    %15 = arith.truncf %14 : vector<8x32xf32> to vector<8x32xbf16>
    %c0_7 = arith.constant 0 : index
    %c0_8 = arith.constant 0 : index
    %c0_9 = arith.constant 0 : index
    %16 = vector.load %arg3[%c0_7, %c0_8, %c0_9] : memref<1x1x8xf32, #tpu.memory_space<vmem>>, vector<1x1x8xf32>
    %17 = vector.shape_cast %16 : vector<1x1x8xf32> to vector<1x8xf32>
    %18 = vector.extract_strided_slice %15 {offsets = [0, 0], sizes = [8, 8], strides = [1, 1]} : vector<8x32xbf16> to vector<8x8xbf16>
    %c0_10 = arith.constant 0 : index
    %c0_11 = arith.constant 0 : index
    %c0_12 = arith.constant 0 : index
    %c0_13 = arith.constant 0 : index
    %19 = vector.load %arg9[%c0_10, %c0_11, %c0_12, %c0_13] : memref<2x4x8x8xbf16, #tpu.memory_space<vmem>>, vector<1x1x8x8xbf16>
    %20 = vector.shape_cast %19 : vector<1x1x8x8xbf16> to vector<8x8xbf16>
    %c1 = arith.constant 1 : index
    %c0_14 = arith.constant 0 : index
    %c0_15 = arith.constant 0 : index
    %c0_16 = arith.constant 0 : index
    %21 = vector.load %arg9[%c1, %c0_14, %c0_15, %c0_16] : memref<2x4x8x8xbf16, #tpu.memory_space<vmem>>, vector<1x1x8x8xbf16>
    %22 = vector.shape_cast %21 : vector<1x1x8x8xbf16> to vector<8x8xbf16>
    %cst_17 = arith.constant dense<0.000000e+00> : vector<8x8xf32>
    %23 = tpu.matmul %18, %20, %cst_17 {dimension_numbers = #tpu.dot_dimension_numbers<[1], [1], [0], [0], [0, 0, 1, 0], [], []>} : vector<8x8xbf16>, vector<8x8xbf16>, vector<8x8xf32> -> vector<8x8xf32>
    %24 = vector.broadcast %17 : vector<1x8xf32> to vector<8x8xf32>
    %25 = arith.addf %23, %24 : vector<8x8xf32>
    %cst_18 = arith.constant dense<0xFF800000> : vector<8xf32>
    %26 = vector.multi_reduction <maximumf>, %25, %cst_18 [1] : vector<8x8xf32> to vector<8xf32>
    %27 = vector.shape_cast %26 : vector<8xf32> to vector<8x1xf32>
    %28 = vector.broadcast %27 : vector<8x1xf32> to vector<8x8xf32>
    %29 = arith.subf %25, %28 : vector<8x8xf32>
    %30 = math.exp %29 : vector<8x8xf32>
    %cst_19 = arith.constant dense<0.000000e+00> : vector<8xf32>
    %31 = vector.multi_reduction <add>, %30, %cst_19 [1] : vector<8x8xf32> to vector<8xf32>
    %32 = vector.shape_cast %31 : vector<8xf32> to vector<8x1xf32>
    %33 = arith.truncf %30 : vector<8x8xf32> to vector<8x8xbf16>
    %cst_20 = arith.constant dense<0.000000e+00> : vector<8x8xf32>
    %34 = tpu.matmul %33, %22, %cst_20 {dimension_numbers = #tpu.dot_dimension_numbers<[1], [0], [0], [1], [0, 0, 1, 1], [], []>} : vector<8x8xbf16>, vector<8x8xbf16>, vector<8x8xf32> -> vector<8x8xf32>
    %35 = tpu.reciprocal %32 {approx = true} : vector<8x1xf32> -> vector<8x1xf32>
    %36 = vector.broadcast %35 : vector<8x1xf32> to vector<8x8xf32>
    %37 = arith.mulf %34, %36 : vector<8x8xf32>
    %38 = vector.extract_strided_slice %15 {offsets = [0, 8], sizes = [8, 8], strides = [1, 1]} : vector<8x32xbf16> to vector<8x8xbf16>
    %c0_21 = arith.constant 0 : index
    %c1_22 = arith.constant 1 : index
    %c0_23 = arith.constant 0 : index
    %c0_24 = arith.constant 0 : index
    %39 = vector.load %arg9[%c0_21, %c1_22, %c0_23, %c0_24] : memref<2x4x8x8xbf16, #tpu.memory_space<vmem>>, vector<1x1x8x8xbf16>
    %40 = vector.shape_cast %39 : vector<1x1x8x8xbf16> to vector<8x8xbf16>
    %c1_25 = arith.constant 1 : index
    %c1_26 = arith.constant 1 : index
    %c0_27 = arith.constant 0 : index
    %c0_28 = arith.constant 0 : index
    %41 = vector.load %arg9[%c1_25, %c1_26, %c0_27, %c0_28] : memref<2x4x8x8xbf16, #tpu.memory_space<vmem>>, vector<1x1x8x8xbf16>
    %42 = vector.shape_cast %41 : vector<1x1x8x8xbf16> to vector<8x8xbf16>
    %cst_29 = arith.constant dense<0.000000e+00> : vector<8x8xf32>
    %43 = tpu.matmul %38, %40, %cst_29 {dimension_numbers = #tpu.dot_dimension_numbers<[1], [1], [0], [0], [0, 0, 1, 0], [], []>} : vector<8x8xbf16>, vector<8x8xbf16>, vector<8x8xf32> -> vector<8x8xf32>
    %44 = vector.broadcast %17 : vector<1x8xf32> to vector<8x8xf32>
    %45 = arith.addf %43, %44 : vector<8x8xf32>
    %cst_30 = arith.constant dense<0xFF800000> : vector<8xf32>
    %46 = vector.multi_reduction <maximumf>, %45, %cst_30 [1] : vector<8x8xf32> to vector<8xf32>
    %47 = vector.shape_cast %46 : vector<8xf32> to vector<8x1xf32>
    %48 = vector.broadcast %47 : vector<8x1xf32> to vector<8x8xf32>
    %49 = arith.subf %45, %48 : vector<8x8xf32>
    %50 = math.exp %49 : vector<8x8xf32>
    %cst_31 = arith.constant dense<0.000000e+00> : vector<8xf32>
    %51 = vector.multi_reduction <add>, %50, %cst_31 [1] : vector<8x8xf32> to vector<8xf32>
    %52 = vector.shape_cast %51 : vector<8xf32> to vector<8x1xf32>
    %53 = arith.truncf %50 : vector<8x8xf32> to vector<8x8xbf16>
    %cst_32 = arith.constant dense<0.000000e+00> : vector<8x8xf32>
    %54 = tpu.matmul %53, %42, %cst_32 {dimension_numbers = #tpu.dot_dimension_numbers<[1], [0], [0], [1], [0, 0, 1, 1], [], []>} : vector<8x8xbf16>, vector<8x8xbf16>, vector<8x8xf32> -> vector<8x8xf32>
    %55 = tpu.reciprocal %52 {approx = true} : vector<8x1xf32> -> vector<8x1xf32>
    %56 = vector.broadcast %55 : vector<8x1xf32> to vector<8x8xf32>
    %57 = arith.mulf %54, %56 : vector<8x8xf32>
    %58 = vector.extract_strided_slice %15 {offsets = [0, 16], sizes = [8, 8], strides = [1, 1]} : vector<8x32xbf16> to vector<8x8xbf16>
    %c0_33 = arith.constant 0 : index
    %c2 = arith.constant 2 : index
    %c0_34 = arith.constant 0 : index
    %c0_35 = arith.constant 0 : index
    %59 = vector.load %arg9[%c0_33, %c2, %c0_34, %c0_35] : memref<2x4x8x8xbf16, #tpu.memory_space<vmem>>, vector<1x1x8x8xbf16>
    %60 = vector.shape_cast %59 : vector<1x1x8x8xbf16> to vector<8x8xbf16>
    %c1_36 = arith.constant 1 : index
    %c2_37 = arith.constant 2 : index
    %c0_38 = arith.constant 0 : index
    %c0_39 = arith.constant 0 : index
    %61 = vector.load %arg9[%c1_36, %c2_37, %c0_38, %c0_39] : memref<2x4x8x8xbf16, #tpu.memory_space<vmem>>, vector<1x1x8x8xbf16>
    %62 = vector.shape_cast %61 : vector<1x1x8x8xbf16> to vector<8x8xbf16>
    %cst_40 = arith.constant dense<0.000000e+00> : vector<8x8xf32>
    %63 = tpu.matmul %58, %60, %cst_40 {dimension_numbers = #tpu.dot_dimension_numbers<[1], [1], [0], [0], [0, 0, 1, 0], [], []>} : vector<8x8xbf16>, vector<8x8xbf16>, vector<8x8xf32> -> vector<8x8xf32>
    %64 = vector.broadcast %17 : vector<1x8xf32> to vector<8x8xf32>
    %65 = arith.addf %63, %64 : vector<8x8xf32>
    %cst_41 = arith.constant dense<0xFF800000> : vector<8xf32>
    %66 = vector.multi_reduction <maximumf>, %65, %cst_41 [1] : vector<8x8xf32> to vector<8xf32>
    %67 = vector.shape_cast %66 : vector<8xf32> to vector<8x1xf32>
    %68 = vector.broadcast %67 : vector<8x1xf32> to vector<8x8xf32>
    %69 = arith.subf %65, %68 : vector<8x8xf32>
    %70 = math.exp %69 : vector<8x8xf32>
    %cst_42 = arith.constant dense<0.000000e+00> : vector<8xf32>
    %71 = vector.multi_reduction <add>, %70, %cst_42 [1] : vector<8x8xf32> to vector<8xf32>
    %72 = vector.shape_cast %71 : vector<8xf32> to vector<8x1xf32>
    %73 = arith.truncf %70 : vector<8x8xf32> to vector<8x8xbf16>
    %cst_43 = arith.constant dense<0.000000e+00> : vector<8x8xf32>
    %74 = tpu.matmul %73, %62, %cst_43 {dimension_numbers = #tpu.dot_dimension_numbers<[1], [0], [0], [1], [0, 0, 1, 1], [], []>} : vector<8x8xbf16>, vector<8x8xbf16>, vector<8x8xf32> -> vector<8x8xf32>
    %75 = tpu.reciprocal %72 {approx = true} : vector<8x1xf32> -> vector<8x1xf32>
    %76 = vector.broadcast %75 : vector<8x1xf32> to vector<8x8xf32>
    %77 = arith.mulf %74, %76 : vector<8x8xf32>
    %78 = vector.extract_strided_slice %15 {offsets = [0, 24], sizes = [8, 8], strides = [1, 1]} : vector<8x32xbf16> to vector<8x8xbf16>
    %c0_44 = arith.constant 0 : index
    %c3 = arith.constant 3 : index
    %c0_45 = arith.constant 0 : index
    %c0_46 = arith.constant 0 : index
    %79 = vector.load %arg9[%c0_44, %c3, %c0_45, %c0_46] : memref<2x4x8x8xbf16, #tpu.memory_space<vmem>>, vector<1x1x8x8xbf16>
    %80 = vector.shape_cast %79 : vector<1x1x8x8xbf16> to vector<8x8xbf16>
    %c1_47 = arith.constant 1 : index
    %c3_48 = arith.constant 3 : index
    %c0_49 = arith.constant 0 : index
    %c0_50 = arith.constant 0 : index
    %81 = vector.load %arg9[%c1_47, %c3_48, %c0_49, %c0_50] : memref<2x4x8x8xbf16, #tpu.memory_space<vmem>>, vector<1x1x8x8xbf16>
    %82 = vector.shape_cast %81 : vector<1x1x8x8xbf16> to vector<8x8xbf16>
    %cst_51 = arith.constant dense<0.000000e+00> : vector<8x8xf32>
    %83 = tpu.matmul %78, %80, %cst_51 {dimension_numbers = #tpu.dot_dimension_numbers<[1], [1], [0], [0], [0, 0, 1, 0], [], []>} : vector<8x8xbf16>, vector<8x8xbf16>, vector<8x8xf32> -> vector<8x8xf32>
    %84 = vector.broadcast %17 : vector<1x8xf32> to vector<8x8xf32>
    %85 = arith.addf %83, %84 : vector<8x8xf32>
    %cst_52 = arith.constant dense<0xFF800000> : vector<8xf32>
    %86 = vector.multi_reduction <maximumf>, %85, %cst_52 [1] : vector<8x8xf32> to vector<8xf32>
    %87 = vector.shape_cast %86 : vector<8xf32> to vector<8x1xf32>
    %88 = vector.broadcast %87 : vector<8x1xf32> to vector<8x8xf32>
    %89 = arith.subf %85, %88 : vector<8x8xf32>
    %90 = math.exp %89 : vector<8x8xf32>
    %cst_53 = arith.constant dense<0.000000e+00> : vector<8xf32>
    %91 = vector.multi_reduction <add>, %90, %cst_53 [1] : vector<8x8xf32> to vector<8xf32>
    %92 = vector.shape_cast %91 : vector<8xf32> to vector<8x1xf32>
    %93 = arith.truncf %90 : vector<8x8xf32> to vector<8x8xbf16>
    %cst_54 = arith.constant dense<0.000000e+00> : vector<8x8xf32>
    %94 = tpu.matmul %93, %82, %cst_54 {dimension_numbers = #tpu.dot_dimension_numbers<[1], [0], [0], [1], [0, 0, 1, 1], [], []>} : vector<8x8xbf16>, vector<8x8xbf16>, vector<8x8xf32> -> vector<8x8xf32>
    %95 = tpu.reciprocal %92 {approx = true} : vector<8x1xf32> -> vector<8x1xf32>
    %96 = vector.broadcast %95 : vector<8x1xf32> to vector<8x8xf32>
    %97 = arith.mulf %94, %96 : vector<8x8xf32>
    %98 = tpu.concatenate %37, %57, %77, %97 in 1 : vector<8x8xf32>, vector<8x8xf32>, vector<8x8xf32>, vector<8x8xf32> -> vector<8x32xf32>
    %c0_55 = arith.constant 0 : index
    %c0_56 = arith.constant 0 : index
    %c0_57 = arith.constant 0 : index
    %99 = vector.load %arg8[%c0_55, %c0_56, %c0_57] : memref<1x8x32xf32, #tpu.memory_space<vmem>>, vector<1x8x32xf32>
    %100 = vector.shape_cast %99 : vector<1x8x32xf32> to vector<8x32xf32>
    %101 = vector.shape_cast %98 : vector<8x32xf32> to vector<1x8x32xf32>
    tpu.vector_store %arg8[%c0_55, %c0_56, %c0_57], %101 {strides = array<i32>} : memref<1x8x32xf32, #tpu.memory_space<vmem>>, vector<1x8x32xf32>,
    return
  }
  func.func @transform_0(%arg0: i32, %arg1: i32) -> (i32, i32, i32) {
    %c0_i32 = arith.constant 0 : i32
    %c0_i32_0 = arith.constant 0 : i32
    %c0_i32_1 = arith.constant 0 : i32
    return %arg0, %c0_i32, %c0_i32_0 : i32, i32, i32
  }
  func.func @transform_1(%arg0: i32, %arg1: i32) -> (i32, i32, i32) {
    %c0_i32 = arith.constant 0 : i32
    %c0_i32_0 = arith.constant 0 : i32
    %c0_i32_1 = arith.constant 0 : i32
    return %arg0, %c0_i32, %c0_i32_0 : i32, i32, i32
  }
  func.func @transform_2(%arg0: i32, %arg1: i32) -> (i32, i32) {
    %c0_i32 = arith.constant 0 : i32
    %c0_i32_0 = arith.constant 0 : i32
    %c0_i32_1 = arith.constant 0 : i32
    return %c0_i32, %c0_i32_0 : i32, i32
  }
  func.func @transform_3(%arg0: i32, %arg1: i32) -> (i32, i32) {
    %c0_i32 = arith.constant 0 : i32
    %c0_i32_0 = arith.constant 0 : i32
    %c0_i32_1 = arith.constant 0 : i32
    return %c0_i32, %c0_i32_0 : i32, i32
  }
  func.func @transform_4(%arg0: i32, %arg1: i32) -> (i32, i32) {
    %c0_i32 = arith.constant 0 : i32
    %c0_i32_0 = arith.constant 0 : i32
    %c0_i32_1 = arith.constant 0 : i32
    return %c0_i32, %c0_i32_0 : i32, i32
  }
  func.func @transform_5(%arg0: i32, %arg1: i32) -> (i32, i32) {
    %c0_i32 = arith.constant 0 : i32
    %c0_i32_0 = arith.constant 0 : i32
    %c0_i32_1 = arith.constant 0 : i32
    return %c0_i32, %c0_i32_0 : i32, i32
  }
  func.func @transform_6(%arg0: i32, %arg1: i32) -> (i32, i32, i32) {
    %c0_i32 = arith.constant 0 : i32
    %c0_i32_0 = arith.constant 0 : i32
    return %arg0, %arg1, %c0_i32 : i32, i32, i32
  }
}

</mosaic_0001>

<llo_original>
// kernel: tpu_custom_call.1
$region0: #{tpu_custom_call.1}
  #allocation0 [shape = 'u32[]', space=smem, size = 0x4, offset = 0x4, fixed_abs, tag = 'smem constant byte address 0x4 - core index']
  #allocation1 [shape = 'u32[144,128]{1,0:T(1,128)}', space=vmem, size = 0x12000, scoped, tag = 'internal scratch']
  #allocation2 [shape = 'bf16[2,4,8,8]{3,2,1,0:T(8,128)(2,1)}', space=vmem, size = 0x4000, scoped, tag = 'scratch operand']
  %s0 = inlined_call_operand.hbm [shape: bf16[2,8,32], index: 0, kind: input, shape index: {}]
  %s1 = inlined_call_operand.vmem [shape: f32[2,1,8], index: 1, kind: input, shape index: {}]
  %s2 = inlined_call_operand.hbm [shape: bf16[32,32], index: 2, kind: input, shape index: {}]
  %s3 = inlined_call_operand.hbm [shape: bf16[32,64], index: 3, kind: input, shape index: {}]
  %s4 = inlined_call_operand.vmem [shape: f32[1,32], index: 4, kind: input, shape index: {}]
  %s5 = inlined_call_operand.vmem [shape: f32[1,64], index: 5, kind: input, shape index: {}]
  %s6 = inlined_call_operand.hbm [shape: f32[2,8,32], index: 6, kind: output, shape index: {}]
  %s7 = sld [smem:[#allocation0]]
  $region73: #{tpu_custom_call.1} parent=0
    _
  %s9 = ssub.s32 1, %s7
  %s10 = scalar_select 0, %s9, %s7
  $region1: #{tpu_custom_call.1} parent=0
    #allocation3 [shape = 'u8[2048]{0}', space=vmem, size = 0x800, scoped, tag = 'input window, operand 0, single buffered']
    #allocation4 [shape = 's32[2]{0}', space=sflag, size = 0x8, scoped, tag = 'scoped memory for tpu_custom_call.1']
    #allocation5 [shape = 's32[2]{0}', space=sflag, size = 0x8, scoped, tag = 'scoped memory for tpu_custom_call.1']
    #allocation6 [shape = 'u8[8192]{0}', space=vmem, size = 0x2000, scoped, tag = 'input window, operand 2, single buffered']
    #allocation7 [shape = 's32[1]{0}', space=sflag, size = 0x4, scoped, tag = 'scoped memory for tpu_custom_call.1']
    #allocation8 [shape = 'u8[8192]{0}', space=vmem, size = 0x2000, scoped, tag = 'input window, operand 3, single buffered']
    #allocation9 [shape = 'u8[8192]{0}', space=vmem, size = 0x2000, scoped, tag = 'output window, operand 0']
    %11 = vsyncpa [#allocation4], 0
    %12 = vsyncpa [#allocation7], 0
    %13 = vsyncpa [#allocation5], 0
    %s14 = scalar_lea.sflag [#allocation5], 1
    %15 = vsyncpa %s14, 0
    loop: start=0, step=1, limit=4
    $region2: #{tpu_custom_call.1} parent=1 // loop_pre_header
      _
    $region3: #{tpu_custom_call.1} parent=1 // loop_header
      %s17 = sphi 0, %s21
      %p18 = scmp.ge.s32.totalorder %s17, 4
      %s24 = sphi 0, %s36
      %s25 = sphi 0, %s32
      %s26 = sphi 0, %s24
      %s27 = sphi 0, %s25
      %s28 = sphi 0, %s26
      %s29 = sphi 0, %s27
      %s39 = sphi 0, %s41
      %s42 = sphi 0, %s39
      %s43 = sphi 0, %s42
      %s59 = sphi 0, %s43
      %s65 = sphi 0, %s67
      %s68 = sphi 0, %s65
      %s69 = sphi 0, %s68
      %s85 = sphi 0, %s69
      %s89 = sphi 0, %s89
      %s91 = sphi 0, %s89
      %s92 = sphi 0, %s91
      %s106 = sphi 0, %s92
      %s110 = sphi 0, %s110
      %s112 = sphi 0, %s110
      %s113 = sphi 0, %s112
      %s127 = sphi 0, %s113
      %s131 = sphi 0, %s131
      %s133 = sphi 0, %s131
      %s134 = sphi 0, %s133
      %s148 = sphi 0, %s134
      %s152 = sphi 0, %s152
      %s154 = sphi 0, %s152
      %s155 = sphi 0, %s154
      %s169 = sphi 0, %s155
      %s177 = sphi 0, %s179
      %s180 = sphi 0, %s177
      %s181 = sphi 0, %s180
      %s197 = sphi 0, %s181
    $region4: #{tpu_custom_call.1} parent=1 // loop_header_branch
      %20 = sbr.rel (%p18) target = $region8
    $region5: #{tpu_custom_call.1} parent=1 // loop_body
      %s22 = ssub.s32 %s17, 1
      %s23 = ssub.s32 %s17, 2
      %s30 = sadd.s32 1, %s25
      %p31 = scmp.ge.s32.totalorder %s30, 1
      %s32 = scalar_select %p31, 0, %s30
      %s33 = sadd.s32 1, %s24
      %s34 = scalar_select %p31, %s33, %s24
      %p35 = scmp.ge.s32.totalorder %s34, 2
      %s36 = scalar_select %p35, 0, %s34
      %s37 = ssub.s32 %s24, %s36
      %p38 = scmp.eq.s32.totalorder %s37, 0
      %s40 = sadd.s32 %s39, 1
      %s41 = scalar_select %p38, %s39, %s40
      %p44 = pneg %p38
      %p45 = scmp.eq.s32.totalorder %s17, 1
      %p46 = por %p44, %p45
      %p47 = scmp.ne.s32.totalorder %s39, %s42
      %p48 = scmp.eq.s32.totalorder %s17, 0
      %p49 = por %p47, %p48
      %p50 = scmp.ne.s32.totalorder %s39, %s42
      %p51 = scmp.eq.s32.totalorder %s22, 1
      %p52 = por %p50, %p51
      %p53 = scmp.ne.s32.totalorder %s42, %s43
      %p54 = scmp.eq.s32.totalorder %s22, 0
      %p55 = por %p53, %p54
      %p56 = scmp.ne.s32.totalorder %s42, %s43
      %p57 = scmp.eq.s32.totalorder %s23, 1
      %p58 = por %p56, %p57
      %p60 = scmp.ne.s32.totalorder %s43, %s59
      %p61 = scmp.eq.s32.totalorder %s23, 0
      %p62 = por %p60, %p61
      %s63 = ssub.s32 %s24, %s36
      %p64 = scmp.eq.s32.totalorder %s63, 0
      %s66 = sadd.s32 %s65, 1
      %s67 = scalar_select %p64, %s65, %s66
      %p70 = pneg %p64
      %p71 = scmp.eq.s32.totalorder %s17, 1
      %p72 = por %p70, %p71
      %p73 = scmp.ne.s32.totalorder %s65, %s68
      %p74 = scmp.eq.s32.totalorder %s17, 0
      %p75 = por %p73, %p74
      %p76 = scmp.ne.s32.totalorder %s65, %s68
      %p77 = scmp.eq.s32.totalorder %s22, 1
      %p78 = por %p76, %p77
      %p79 = scmp.ne.s32.totalorder %s68, %s69
      %p80 = scmp.eq.s32.totalorder %s22, 0
      %p81 = por %p79, %p80
      %p82 = scmp.ne.s32.totalorder %s68, %s69
      %p83 = scmp.eq.s32.totalorder %s23, 1
      %p84 = por %p82, %p83
      %p86 = scmp.ne.s32.totalorder %s69, %s85
      %p87 = scmp.eq.s32.totalorder %s23, 0
      %p88 = por %p86, %p87
      %s90 = sadd.s32 %s89, 1
      %p93 = scmp.eq.s32.totalorder %s17, 1
      %p94 = scmp.ne.s32.totalorder %s89, %s91
      %p95 = scmp.eq.s32.totalorder %s17, 0
      %p96 = por %p94, %p95
      %p97 = scmp.ne.s32.totalorder %s89, %s91
      %p98 = scmp.eq.s32.totalorder %s22, 1
      %p99 = por %p97, %p98
      %p100 = scmp.ne.s32.totalorder %s91, %s92
      %p101 = scmp.eq.s32.totalorder %s22, 0
      %p102 = por %p100, %p101
      %p103 = scmp.ne.s32.totalorder %s91, %s92
      %p104 = scmp.eq.s32.totalorder %s23, 1
      %p105 = por %p103, %p104
      %p107 = scmp.ne.s32.totalorder %s92, %s106
      %p108 = scmp.eq.s32.totalorder %s23, 0
      %p109 = por %p107, %p108
      %s111 = sadd.s32 %s110, 1
      %p114 = scmp.eq.s32.totalorder %s17, 1
      %p115 = scmp.ne.s32.totalorder %s110, %s112
      %p116 = scmp.eq.s32.totalorder %s17, 0
      %p117 = por %p115, %p116
      %p118 = scmp.ne.s32.totalorder %s110, %s112
      %p119 = scmp.eq.s32.totalorder %s22, 1
      %p120 = por %p118, %p119
      %p121 = scmp.ne.s32.totalorder %s112, %s113
      %p122 = scmp.eq.s32.totalorder %s22, 0
      %p123 = por %p121, %p122
      %p124 = scmp.ne.s32.totalorder %s112, %s113
      %p125 = scmp.eq.s32.totalorder %s23, 1
      %p126 = por %p124, %p125
      %p128 = scmp.ne.s32.totalorder %s113, %s127
      %p129 = scmp.eq.s32.totalorder %s23, 0
      %p130 = por %p128, %p129
      %s132 = sadd.s32 %s131, 1
      %p135 = scmp.eq.s32.totalorder %s17, 1
      %p136 = scmp.ne.s32.totalorder %s131, %s133
      %p137 = scmp.eq.s32.totalorder %s17, 0
      %p138 = por %p136, %p137
      %p139 = scmp.ne.s32.totalorder %s131, %s133
      %p140 = scmp.eq.s32.totalorder %s22, 1
      %p141 = por %p139, %p140
      %p142 = scmp.ne.s32.totalorder %s133, %s134
      %p143 = scmp.eq.s32.totalorder %s22, 0
      %p144 = por %p142, %p143
      %p145 = scmp.ne.s32.totalorder %s133, %s134
      %p146 = scmp.eq.s32.totalorder %s23, 1
      %p147 = por %p145, %p146
      %p149 = scmp.ne.s32.totalorder %s134, %s148
      %p150 = scmp.eq.s32.totalorder %s23, 0
      %p151 = por %p149, %p150
      %s153 = sadd.s32 %s152, 1
      %p156 = scmp.eq.s32.totalorder %s17, 1
      %p157 = scmp.ne.s32.totalorder %s152, %s154
      %p158 = scmp.eq.s32.totalorder %s17, 0
      %p159 = por %p157, %p158
      %p160 = scmp.ne.s32.totalorder %s152, %s154
      %p161 = scmp.eq.s32.totalorder %s22, 1
      %p162 = por %p160, %p161
      %p163 = scmp.ne.s32.totalorder %s154, %s155
      %p164 = scmp.eq.s32.totalorder %s22, 0
      %p165 = por %p163, %p164
      %p166 = scmp.ne.s32.totalorder %s154, %s155
      %p167 = scmp.eq.s32.totalorder %s23, 1
      %p168 = por %p166, %p167
      %p170 = scmp.ne.s32.totalorder %s155, %s169
      %p171 = scmp.eq.s32.totalorder %s23, 0
      %p172 = por %p170, %p171
      %s173 = ssub.s32 %s24, %s36
      %s174 = ssub.s32 %s25, %s32
      %s175 = sor.u32 %s173, %s174
      %p176 = scmp.eq.s32.totalorder %s175, 0
      %s178 = sadd.s32 %s177, 1
      %s179 = scalar_select %p176, %s177, %s178
      %p182 = pneg %p176
      %p183 = scmp.eq.s32.totalorder %s17, 1
      %p184 = por %p182, %p183
      %p185 = scmp.ne.s32.totalorder %s177, %s180
      %p186 = scmp.eq.s32.totalorder %s17, 0
      %p187 = por %p185, %p186
      %p188 = scmp.ne.s32.totalorder %s177, %s180
      %p189 = scmp.eq.s32.totalorder %s22, 1
      %p190 = por %p188, %p189
      %p191 = scmp.ne.s32.totalorder %s180, %s181
      %p192 = scmp.eq.s32.totalorder %s22, 0
      %p193 = por %p191, %p192
      %p194 = scmp.ne.s32.totalorder %s180, %s181
      %p195 = scmp.eq.s32.totalorder %s23, 1
      %p196 = por %p194, %p195
      %p198 = scmp.ne.s32.totalorder %s181, %s197
      %p199 = scmp.eq.s32.totalorder %s23, 0
      %p200 = por %p198, %p199
      %p201 = scmp.le.s32.totalorder 1, %s17
      %p202 = scmp.lt.s32.totalorder %s17, 3
      %p203 = pnand %p201, %p202
      %p204 = pneg %p203
      // Predicated region
      $region9: #{tpu_custom_call.1} parent=5 // pred_check
        _
      $region10: #{tpu_custom_call.1} parent=5 // pred_check_branch
        %206 = sbr.rel (%p203) target = $region12
      $region11: #{tpu_custom_call.1} parent=5 // pred_region
        %s207 = ssub.s32 %s17, 1
        // Predicated region
        $region13: #{tpu_custom_call.1} parent=11 // pred_check
          %p208 = pneg %p55
        $region14: #{tpu_custom_call.1} parent=11 // pred_check_branch
          %210 = sbr.rel (%p208) target = $region16
        $region15: #{tpu_custom_call.1} parent=11 // pred_region
          %s212 = ssub.s32 64, 64
          %213 = vsyncadd [#allocation4], %s212
          %s214 = smul.addr %s26, 64
          %s215 = scalar_lea.hbm %s0, %s214
          %s217 = sshll.u32 [#allocation3], 4
          %s218 = int_to_ptr.vmem [resolvable:$true] %s217
          %220 = dma.hbm_to_vmem [thread:$0]  %s215, 64, %s218, [#allocation4]
        $region16: #{tpu_custom_call.1} parent=11 // pred_fallthru
          _
        // Predicated region
        $region17: #{tpu_custom_call.1} parent=11 // pred_check
          %p221 = pneg %p102
        $region18: #{tpu_custom_call.1} parent=11 // pred_check_branch
          %223 = sbr.rel (%p221) target = $region20
        $region19: #{tpu_custom_call.1} parent=11 // pred_region
          %s225 = ssub.s32 256, 256
          %226 = vsyncadd [#allocation7], %s225
          %s227 = sshll.u32 [#allocation6], 4
          %s228 = int_to_ptr.vmem [resolvable:$true] %s227
          %233 = dma.hbm_to_vmem [thread:$0]  %s2, 256, %s228, [#allocation7], 64, 64, 4
        $region20: #{tpu_custom_call.1} parent=11 // pred_fallthru
          _
        // Predicated region
        $region21: #{tpu_custom_call.1} parent=11 // pred_check
          %p234 = pneg %p123
        $region22: #{tpu_custom_call.1} parent=11 // pred_check_branch
          %236 = sbr.rel (%p234) target = $region24
        $region23: #{tpu_custom_call.1} parent=11 // pred_region
          %s238 = ssub.s32 256, 256
          %239 = vsyncadd [#allocation7], %s238
          %s240 = sshll.u32 [#allocation8], 4
          %s241 = int_to_ptr.vmem [resolvable:$true] %s240
          %246 = dma.hbm_to_vmem [thread:$0]  %s3, 256, %s241, [#allocation7], 64, 64, 4
        $region24: #{tpu_custom_call.1} parent=11 // pred_fallthru
          _
        // Predicated region
        $region25: #{tpu_custom_call.1} parent=11 // pred_check
          %p247 = pneg %p144
        $region26: #{tpu_custom_call.1} parent=11 // pred_check_branch
          %249 = sbr.rel (%p247) target = $region28
        $region27: #{tpu_custom_call.1} parent=11 // pred_region
          _
        $region28: #{tpu_custom_call.1} parent=11 // pred_fallthru
          _
        // Predicated region
        $region29: #{tpu_custom_call.1} parent=11 // pred_check
          %p250 = pneg %p165
        $region30: #{tpu_custom_call.1} parent=11 // pred_check_branch
          %252 = sbr.rel (%p250) target = $region32
        $region31: #{tpu_custom_call.1} parent=11 // pred_region
          _
        $region32: #{tpu_custom_call.1} parent=11 // pred_fallthru
          _
      $region12: #{tpu_custom_call.1} parent=5 // pred_fallthru
        _
      %p253 = scmp.lt.s32.totalorder %s17, 2
      // Predicated region
      $region33: #{tpu_custom_call.1} parent=5 // pred_check
        %p254 = pneg %p253
      $region34: #{tpu_custom_call.1} parent=5 // pred_check_branch
        %256 = sbr.rel (%p254) target = $region36
      $region35: #{tpu_custom_call.1} parent=5 // pred_region
        // Predicated region
        $region37: #{tpu_custom_call.1} parent=35 // pred_check
          %p257 = pneg %p75
        $region38: #{tpu_custom_call.1} parent=35 // pred_check_branch
          %259 = sbr.rel (%p257) target = $region40
        $region39: #{tpu_custom_call.1} parent=35 // pred_region
          %p260 = scmp.lt.s32.totalorder %s24, 1
          %s261 = scalar_select %p260, %s24, 1
          %s262 = scalar_lea.vmem %s1, %s261
        $region40: #{tpu_custom_call.1} parent=35 // pred_fallthru
          _
      $region36: #{tpu_custom_call.1} parent=5 // pred_fallthru
        _
      %p263 = scmp.le.s32.totalorder 1, %s17
      %p264 = scmp.lt.s32.totalorder %s17, 3
      %p265 = pnand %p263, %p264
      %p266 = pneg %p265
      // Predicated region
      $region41: #{tpu_custom_call.1} parent=5 // pred_check
        _
      $region42: #{tpu_custom_call.1} parent=5 // pred_check_branch
        %268 = sbr.rel (%p265) target = $region44
      $region43: #{tpu_custom_call.1} parent=5 // pred_region
        %s269 = ssub.s32 %s17, 1
        // Predicated region
        $region45: #{tpu_custom_call.1} parent=43 // pred_check
          %p270 = pneg %p55
        $region46: #{tpu_custom_call.1} parent=43 // pred_check_branch
          %272 = sbr.rel (%p270) target = $region48
        $region47: #{tpu_custom_call.1} parent=43 // pred_region
          %273 = dma.done [#allocation4], 64
        $region48: #{tpu_custom_call.1} parent=43 // pred_fallthru
          _
        // Predicated region
        $region49: #{tpu_custom_call.1} parent=43 // pred_check
          %p274 = pneg %p102
        $region50: #{tpu_custom_call.1} parent=43 // pred_check_branch
          %276 = sbr.rel (%p274) target = $region52
        $region51: #{tpu_custom_call.1} parent=43 // pred_region
          %277 = dma.done [#allocation7], 256
        $region52: #{tpu_custom_call.1} parent=43 // pred_fallthru
          _
        // Predicated region
        $region53: #{tpu_custom_call.1} parent=43 // pred_check
          %p278 = pneg %p123
        $region54: #{tpu_custom_call.1} parent=43 // pred_check_branch
          %280 = sbr.rel (%p278) target = $region56
        $region55: #{tpu_custom_call.1} parent=43 // pred_region
          %281 = dma.done [#allocation7], 256
        $region56: #{tpu_custom_call.1} parent=43 // pred_fallthru
          _
        %p282 = pneg %p55
        %p283 = pneg %p52
        %p284 = scmp.lt.s32.totalorder %s26, 1
        %s285 = scalar_select %p284, %s26, 1
        %s286 = scalar_lea.vmem %s1, %s285
        %p287 = pneg %p81
        %p288 = pneg %p78
        %p289 = pneg %p102
        %p290 = pneg %p99
        %p291 = pneg %p123
        %p292 = pneg %p120
        %p293 = pneg %p144
        %p294 = pneg %p141
        %p295 = pneg %p165
        %p296 = pneg %p162
        %p297 = pneg %p193
        %p298 = pneg %p190
        %s299 = sand.u32 %s180, 1
        %s300 = scalar_lea.sflag [#allocation5], %s299
        %s301 = sand.u32 %s180, 1
        %s302 = smul.addr %s301, 8
        %s303 = scalar_lea.vmem [#allocation9], %s302
        %p304 = scmp.lt.s32.totalorder %s26, 1
        %s305 = scalar_select %p304, %s26, 1
        %s306 = scalar_lea.vmem %s1, %s305
        %p308 = scmp.eq.s32.totalorder %s27, 0
        // Predicated region
        $region57: #{tpu_custom_call.1} parent=43 // pred_check
          %p309 = pneg %p308
        $region58: #{tpu_custom_call.1} parent=43 // pred_check_branch
          %311 = sbr.rel (%p309) target = $region60
        $region59: #{tpu_custom_call.1} parent=43 // pred_region
          %v312 = vld [vmem:[#allocation3] sm:$0xf]
          %v313 = vld [vmem:[#allocation8] sm:$0xf]
          %v314 = vld [vmem:[#allocation8 + $0x4] sm:$0xf]
          %v315 = vld [vmem:[#allocation8 + $0x8] sm:$0xf]
          %v316 = vld [vmem:[#allocation8 + $0xc] sm:$0xf]
          %v317 = vld [vmem:[%s5] sm:$0x1]
          %v319 = vlaneseq
          %v320 = vshrl.u32 %v319, 7
          %v321 = vsub.s32 0, %v320
          %v322 = vrot.slane %v317, %v321
          %v328 = vunpack.c.l.b16 %v313
          %v329 = vunpack.c.l.b16 %v314
          %v330 = vunpack.c.l.b16 %v315
          %v331 = vunpack.c.l.b16 %v316
          %v332 = vpack.c.b16 %v329, %v328
          %v333 = vpack.c.b16 %v331, %v330
          %vm336 = vcmask 261120
          %v338 = vsel %vm336, %v312, 0
          %340 = vmatprep.subr.bf16.mxu0 0
          %341 = vmatpush1.bf16.msra.mxu0 %v332
          %342 = vmatprep.subr.bf16.mxu0 0
          %343 = vmatpush1.bf16.msra.mxu0 %v333
          %344 = vmatprep.subr.bf16.mxu0 0
          %345 = vmatpush1.bf16.msra.mxu0 0
          %346 = vmatprep.subr.bf16.mxu0 0
          %347 = vmatpush1.bf16.msra.mxu0 0
          %348 = vmatprep.subr.bf16.mxu0 0
          %349 = vmatpush1.bf16.msra.mxu0 0
          %350 = vmatprep.subr.bf16.mxu0 0
          %351 = vmatpush1.bf16.msra.mxu0 0
          %352 = vmatprep.subr.bf16.mxu0 0
          %353 = vmatpush1.bf16.msra.mxu0 0
          %354 = vmatprep.subr.bf16.mxu0 0
          %355 = vmatpush1.bf16.msra.mxu0 0
          %356 = vmatprep.subr.bf16.mxu0 0
          %357 = vmatpush1.bf16.msra.mxu0 0
          %358 = vmatprep.subr.bf16.mxu0 0
          %359 = vmatpush1.bf16.msra.mxu0 0
          %360 = vmatprep.subr.bf16.mxu0 0
          %361 = vmatpush1.bf16.msra.mxu0 0
          %362 = vmatprep.subr.bf16.mxu0 0
          %363 = vmatpush1.bf16.msra.mxu0 0
          %364 = vmatprep.subr.bf16.mxu0 0
          %365 = vmatpush1.bf16.msra.mxu0 0
          %366 = vmatprep.subr.bf16.mxu0 0
          %367 = vmatpush1.bf16.msra.mxu0 0
          %368 = vmatprep.subr.bf16.mxu0 0
          %369 = vmatpush1.bf16.msra.mxu0 0
          %370 = vmatprep.subr.bf16.mxu0 0
          %371 = vmatpush1.bf16.msra.mxu0 0
          %372 = vmatprep.mubr.bf16.mxu0 0
          %373 = vmatmul.mubr.bf16.gmra.mrb[0].mxu0 %v338
          %v374 = vpop.f32.mrb[0].mxu0
          %v375 = vadd.f32 %v322, %v374
          %v376 = vpop.f32.mrb[0].mxu0
          %v377 = vpop.f32.mrb[0].mxu0
          %v378 = vpop.f32.mrb[0].mxu0
          %379 = vdwg.mxu0
          %v380 = vpack.c.bf16 %v375, %v375
          %vm381 = vcmask 60416
          %382 = vst.msk [vmem:[#allocation2] sm:$0xf] %vm381, %v380
          %v384 = vunpack.c.l.b16 %v380
          %v385 = vpack.c.b16 %v384, %v384
          %386 = vrot.lane.b32.xlu0 %v385, 96
          %v387 = vpop.permute.xlu0 %386
          %s389 = scalar_lea.vmem [#allocation2], 16
          %390 = vst.msk [vmem:[%s389] sm:$0xf] %vm381, %v387
          %391 = vrot.lane.b32.xlu0 %v385, 120
          %v392 = vpop.permute.xlu0 %391
          %s394 = scalar_lea.vmem [#allocation2], 4
          %395 = vst.msk [vmem:[%s394] sm:$0xf] %vm381, %v392
          %396 = vrot.lane.b32.xlu0 %v385, 88
          %v397 = vpop.permute.xlu0 %396
          %s399 = scalar_lea.vmem [#allocation2], 20
          %400 = vst.msk [vmem:[%s399] sm:$0xf] %vm381, %v397
          %401 = vrot.lane.b32.xlu0 %v385, 112
          %v402 = vpop.permute.xlu0 %401
          %s404 = scalar_lea.vmem [#allocation2], 8
          %405 = vst.msk [vmem:[%s404] sm:$0xf] %vm381, %v402
          %406 = vrot.lane.b32.xlu0 %v385, 80
          %v407 = vpop.permute.xlu0 %406
          %s409 = scalar_lea.vmem [#allocation2], 24
          %410 = vst.msk [vmem:[%s409] sm:$0xf] %vm381, %v407
          %411 = vrot.lane.b32.xlu0 %v385, 104
          %v412 = vpop.permute.xlu0 %411
          %s414 = scalar_lea.vmem [#allocation2], 12
          %415 = vst.msk [vmem:[%s414] sm:$0xf] %vm381, %v412
          %416 = vrot.lane.b32.xlu0 %v385, 72
          %v417 = vpop.permute.xlu0 %416
          %s419 = scalar_lea.vmem [#allocation2], 28
          %420 = vst.msk [vmem:[%s419] sm:$0xf] %vm381, %v417
        $region60: #{tpu_custom_call.1} parent=43 // pred_fallthru
          _
        %s421 = smul.u32 %s27, 8
        %s422 = sshra.s32 %s421, 3
        %s423 = sand.u32 %s421, 7
        %s424 = smul.addr %s422, 4
        %s425 = scalar_lea.vmem [#allocation3], %s424
        %v426 = vld [vmem:[%s425] sm:$0xf]
        %v427 = vld [vmem:[#allocation6] sm:$0xf]
        %v428 = vld [vmem:[#allocation6 + $0x4] sm:$0xf]
        %v429 = vld [vmem:[#allocation6 + $0x8] sm:$0xf]
        %v430 = vld [vmem:[#allocation6 + $0xc] sm:$0xf]
        %v431 = vld [vmem:[%s4] sm:$0x1]
        %v433 = vlaneseq
        %v434 = vshrl.u32 %v433, 7
        %v435 = vsub.s32 0, %v434
        %v436 = vrot.slane %v431, %v435
        %v442 = vunpack.c.l.b16 %v427
        %v443 = vunpack.c.l.b16 %v428
        %v444 = vunpack.c.l.b16 %v429
        %v445 = vunpack.c.l.b16 %v430
        %v446 = vpack.c.b16 %v443, %v442
        %v447 = vpack.c.b16 %v445, %v444
        %vm450 = vcmask 261120
        %v452 = vsel %vm450, %v426, 0
        %454 = vmatprep.subr.bf16.mxu0 0
        %455 = vmatpush1.bf16.msra.mxu0 %v446
        %456 = vmatprep.subr.bf16.mxu0 0
        %457 = vmatpush1.bf16.msra.mxu0 %v447
        %458 = vmatprep.subr.bf16.mxu0 0
        %459 = vmatpush1.bf16.msra.mxu0 0
        %460 = vmatprep.subr.bf16.mxu0 0
        %461 = vmatpush1.bf16.msra.mxu0 0
        %462 = vmatprep.subr.bf16.mxu0 0
        %463 = vmatpush1.bf16.msra.mxu0 0
        %464 = vmatprep.subr.bf16.mxu0 0
        %465 = vmatpush1.bf16.msra.mxu0 0
        %466 = vmatprep.subr.bf16.mxu0 0
        %467 = vmatpush1.bf16.msra.mxu0 0
        %468 = vmatprep.subr.bf16.mxu0 0
        %469 = vmatpush1.bf16.msra.mxu0 0
        %470 = vmatprep.subr.bf16.mxu0 0
        %471 = vmatpush1.bf16.msra.mxu0 0
        %472 = vmatprep.subr.bf16.mxu0 0
        %473 = vmatpush1.bf16.msra.mxu0 0
        %474 = vmatprep.subr.bf16.mxu0 0
        %475 = vmatpush1.bf16.msra.mxu0 0
        %476 = vmatprep.subr.bf16.mxu0 0
        %477 = vmatpush1.bf16.msra.mxu0 0
        %478 = vmatprep.subr.bf16.mxu0 0
        %479 = vmatpush1.bf16.msra.mxu0 0
        %480 = vmatprep.subr.bf16.mxu0 0
        %481 = vmatpush1.bf16.msra.mxu0 0
        %482 = vmatprep.subr.bf16.mxu0 0
        %483 = vmatpush1.bf16.msra.mxu0 0
        %484 = vmatprep.subr.bf16.mxu0 0
        %485 = vmatpush1.bf16.msra.mxu0 0
        %486 = vmatprep.mubr.bf16.mxu0 0
        %487 = vmatmul.mubr.bf16.gmra.mrb[0].mxu0 %v452
        %v488 = vpop.f32.mrb[0].mxu0
        %v489 = vadd.f32 %v436, %v488
        %v490 = vpop.f32.mrb[0].mxu0
        %v491 = vpop.f32.mrb[0].mxu0
        %v492 = vpop.f32.mrb[0].mxu0
        %493 = vdwg.mxu0
        %v494 = vmul.f32 %v489, 0.35355338
        %v495 = vpack.c.bf16 %v494, %v494
        %v496 = vld [vmem:[%s306] sm:$0x1]
        %v497 = vld [vmem:[#allocation2] sm:$0xf]
        %s498 = scalar_lea.vmem [#allocation2], 16
        %v499 = vld [vmem:[%s498] sm:$0xf]
        %v501 = vlaneseq
        %v502 = vshrl.u32 %v501, 7
        %v503 = vsub.s32 0, %v502
        %v504 = vrot.slane %v496, %v503
        %vm506 = vcmask 64512
        %v508 = vsel %vm506, %v495, 0
        %v511 = vsel %vm506, %v497, 0
        %513 = vmatprep.subr.bf16.mxu0 0
        %514 = vmatpush1.bf16.xpose.msra.mxu0 %v511
        %515 = vmatprep.subr.bf16.mxu0 0
        %516 = vmatpush1.bf16.xpose.msra.mxu0 0
        %517 = vmatprep.subr.bf16.mxu0 0
        %518 = vmatpush1.bf16.xpose.msra.mxu0 0
        %519 = vmatprep.subr.bf16.mxu0 0
        %520 = vmatpush1.bf16.xpose.msra.mxu0 0
        %521 = vmatprep.subr.bf16.mxu0 0
        %522 = vmatpush1.bf16.xpose.msra.mxu0 0
        %523 = vmatprep.subr.bf16.mxu0 0
        %524 = vmatpush1.bf16.xpose.msra.mxu0 0
        %525 = vmatprep.subr.bf16.mxu0 0
        %526 = vmatpush1.bf16.xpose.msra.mxu0 0
        %527 = vmatprep.subr.bf16.mxu0 0
        %528 = vmatpush1.bf16.xpose.msra.mxu0 0
        %529 = vmatprep.subr.bf16.mxu0 0
        %530 = vmatpush1.bf16.xpose.msra.mxu0 0
        %531 = vmatprep.subr.bf16.mxu0 0
        %532 = vmatpush1.bf16.xpose.msra.mxu0 0
        %533 = vmatprep.subr.bf16.mxu0 0
        %534 = vmatpush1.bf16.xpose.msra.mxu0 0
        %535 = vmatprep.subr.bf16.mxu0 0
        %536 = vmatpush1.bf16.xpose.msra.mxu0 0
        %537 = vmatprep.subr.bf16.mxu0 0
        %538 = vmatpush1.bf16.xpose.msra.mxu0 0
        %539 = vmatprep.subr.bf16.mxu0 0
        %540 = vmatpush1.bf16.xpose.msra.mxu0 0
        %541 = vmatprep.subr.bf16.mxu0 0
        %542 = vmatpush1.bf16.xpose.msra.mxu0 0
        %543 = vmatprep.subr.bf16.mxu0 0
        %544 = vmatpush1.bf16.xpose.msra.mxu0 0
        %545 = vmatprep.mubr.bf16.mxu0 0
        %546 = vmatmul.mubr.bf16.gmra.mrb[0].mxu0 %v508
        %v547 = vpop.f32.mrb[0].mxu0
        %v548 = vadd.f32 %v504, %v547
        %v549 = vpop.f32.mrb[0].mxu0
        %v550 = vpop.f32.mrb[0].mxu0
        %v551 = vpop.f32.mrb[0].mxu0
        %552 = vdwg.mxu0
        %v553 = vsel %vm506, %v548, -inf
        %554 = vmax.xlane.f32.xlu0 %v553
        %v555 = vpop.xlane.xlu0 %554
        %v556 = vsub.f32 %v548, %v555
        %v557 = vmul.f32 %v556, 1.442695
        %v558 = vpow.pop %v557
        %v559 = vsel %vm506, %v558, 0.0
        %560 = vadd.xlane.f32.xlu0 %v559
        %v561 = vpop.xlane.xlu0 %560
        %v562 = vpack.c.bf16 %v558, %v558
        %v564 = vsel %vm506, %v562, 0
        %vm566 = vcmask 1043456
        %v568 = vsel %vm566, %v499, 0
        %570 = vmatprep.subr.bf16.mxu0 0
        %571 = vmatpush1.bf16.msra.mxu0 %v568
        %572 = vmatprep.subr.bf16.mxu0 0
        %573 = vmatpush1.bf16.msra.mxu0 0
        %574 = vmatprep.subr.bf16.mxu0 0
        %575 = vmatpush1.bf16.msra.mxu0 0
        %576 = vmatprep.subr.bf16.mxu0 0
        %577 = vmatpush1.bf16.msra.mxu0 0
        %578 = vmatprep.subr.bf16.mxu0 0
        %579 = vmatpush1.bf16.msra.mxu0 0
        %580 = vmatprep.subr.bf16.mxu0 0
        %581 = vmatpush1.bf16.msra.mxu0 0
        %582 = vmatprep.subr.bf16.mxu0 0
        %583 = vmatpush1.bf16.msra.mxu0 0
        %584 = vmatprep.subr.bf16.mxu0 0
        %585 = vmatpush1.bf16.msra.mxu0 0
        %586 = vmatprep.subr.bf16.mxu0 0
        %587 = vmatpush1.bf16.msra.mxu0 0
        %588 = vmatprep.subr.bf16.mxu0 0
        %589 = vmatpush1.bf16.msra.mxu0 0
        %590 = vmatprep.subr.bf16.mxu0 0
        %591 = vmatpush1.bf16.msra.mxu0 0
        %592 = vmatprep.subr.bf16.mxu0 0
        %593 = vmatpush1.bf16.msra.mxu0 0
        %594 = vmatprep.subr.bf16.mxu0 0
        %595 = vmatpush1.bf16.msra.mxu0 0
        %596 = vmatprep.subr.bf16.mxu0 0
        %597 = vmatpush1.bf16.msra.mxu0 0
        %598 = vmatprep.subr.bf16.mxu0 0
        %599 = vmatpush1.bf16.msra.mxu0 0
        %600 = vmatprep.subr.bf16.mxu0 0
        %601 = vmatpush1.bf16.msra.mxu0 0
        %602 = vmatprep.mubr.bf16.mxu0 0
        %603 = vmatmul.mubr.bf16.gmra.mrb[0].mxu0 %v564
        %v604 = vpop.f32.mrb[0].mxu0
        %v605 = vadd.f32 0.0, %v604
        %v606 = vpop.f32.mrb[0].mxu0
        %v607 = vpop.f32.mrb[0].mxu0
        %v608 = vpop.f32.mrb[0].mxu0
        %609 = vdwg.mxu0
        %v610 = vrcp.pop %v561
        %v611 = vmul.f32 %v605, %v610
        %s612 = scalar_lea.vmem [#allocation2], 4
        %v613 = vld [vmem:[%s612] sm:$0xf]
        %s614 = scalar_lea.vmem [#allocation2], 20
        %v615 = vld [vmem:[%s614] sm:$0xf]
        %617 = vrot.lane.b32.xlu0 %v495, 120
        %v618 = vpop.permute.xlu0 %617
        %v620 = vsel %vm506, %v618, 0
        %v623 = vsel %vm506, %v613, 0
        %625 = vmatprep.subr.bf16.mxu0 0
        %626 = vmatpush1.bf16.xpose.msra.mxu0 %v623
        %627 = vmatprep.subr.bf16.mxu0 0
        %628 = vmatpush1.bf16.xpose.msra.mxu0 0
        %629 = vmatprep.subr.bf16.mxu0 0
        %630 = vmatpush1.bf16.xpose.msra.mxu0 0
        %631 = vmatprep.subr.bf16.mxu0 0
        %632 = vmatpush1.bf16.xpose.msra.mxu0 0
        %633 = vmatprep.subr.bf16.mxu0 0
        %634 = vmatpush1.bf16.xpose.msra.mxu0 0
        %635 = vmatprep.subr.bf16.mxu0 0
        %636 = vmatpush1.bf16.xpose.msra.mxu0 0
        %637 = vmatprep.subr.bf16.mxu0 0
        %638 = vmatpush1.bf16.xpose.msra.mxu0 0
        %639 = vmatprep.subr.bf16.mxu0 0
        %640 = vmatpush1.bf16.xpose.msra.mxu0 0
        %641 = vmatprep.subr.bf16.mxu0 0
        %642 = vmatpush1.bf16.xpose.msra.mxu0 0
        %643 = vmatprep.subr.bf16.mxu0 0
        %644 = vmatpush1.bf16.xpose.msra.mxu0 0
        %645 = vmatprep.subr.bf16.mxu0 0
        %646 = vmatpush1.bf16.xpose.msra.mxu0 0
        %647 = vmatprep.subr.bf16.mxu0 0
        %648 = vmatpush1.bf16.xpose.msra.mxu0 0
        %649 = vmatprep.subr.bf16.mxu0 0
        %650 = vmatpush1.bf16.xpose.msra.mxu0 0
        %651 = vmatprep.subr.bf16.mxu0 0
        %652 = vmatpush1.bf16.xpose.msra.mxu0 0
        %653 = vmatprep.subr.bf16.mxu0 0
        %654 = vmatpush1.bf16.xpose.msra.mxu0 0
        %655 = vmatprep.subr.bf16.mxu0 0
        %656 = vmatpush1.bf16.xpose.msra.mxu0 0
        %657 = vmatprep.mubr.bf16.mxu0 0
        %658 = vmatmul.mubr.bf16.gmra.mrb[0].mxu0 %v620
        %v659 = vpop.f32.mrb[0].mxu0
        %v660 = vadd.f32 %v504, %v659
        %v661 = vpop.f32.mrb[0].mxu0
        %v662 = vpop.f32.mrb[0].mxu0
        %v663 = vpop.f32.mrb[0].mxu0
        %664 = vdwg.mxu0
        %v665 = vsel %vm506, %v660, -inf
        %666 = vmax.xlane.f32.xlu0 %v665
        %v667 = vpop.xlane.xlu0 %666
        %v668 = vsub.f32 %v660, %v667
        %v669 = vmul.f32 %v668, 1.442695
        %v670 = vpow.pop %v669
        %v671 = vsel %vm506, %v670, 0.0
        %672 = vadd.xlane.f32.xlu0 %v671
        %v673 = vpop.xlane.xlu0 %672
        %v674 = vpack.c.bf16 %v670, %v670
        %v676 = vsel %vm506, %v674, 0
        %v679 = vsel %vm566, %v615, 0
        %681 = vmatprep.subr.bf16.mxu0 0
        %682 = vmatpush1.bf16.msra.mxu0 %v679
        %683 = vmatprep.subr.bf16.mxu0 0
        %684 = vmatpush1.bf16.msra.mxu0 0
        %685 = vmatprep.subr.bf16.mxu0 0
        %686 = vmatpush1.bf16.msra.mxu0 0
        %687 = vmatprep.subr.bf16.mxu0 0
        %688 = vmatpush1.bf16.msra.mxu0 0
        %689 = vmatprep.subr.bf16.mxu0 0
        %690 = vmatpush1.bf16.msra.mxu0 0
        %691 = vmatprep.subr.bf16.mxu0 0
        %692 = vmatpush1.bf16.msra.mxu0 0
        %693 = vmatprep.subr.bf16.mxu0 0
        %694 = vmatpush1.bf16.msra.mxu0 0
        %695 = vmatprep.subr.bf16.mxu0 0
        %696 = vmatpush1.bf16.msra.mxu0 0
        %697 = vmatprep.subr.bf16.mxu0 0
        %698 = vmatpush1.bf16.msra.mxu0 0
        %699 = vmatprep.subr.bf16.mxu0 0
        %700 = vmatpush1.bf16.msra.mxu0 0
        %701 = vmatprep.subr.bf16.mxu0 0
        %702 = vmatpush1.bf16.msra.mxu0 0
        %703 = vmatprep.subr.bf16.mxu0 0
        %704 = vmatpush1.bf16.msra.mxu0 0
        %705 = vmatprep.subr.bf16.mxu0 0
        %706 = vmatpush1.bf16.msra.mxu0 0
        %707 = vmatprep.subr.bf16.mxu0 0
        %708 = vmatpush1.bf16.msra.mxu0 0
        %709 = vmatprep.subr.bf16.mxu0 0
        %710 = vmatpush1.bf16.msra.mxu0 0
        %711 = vmatprep.subr.bf16.mxu0 0
        %712 = vmatpush1.bf16.msra.mxu0 0
        %713 = vmatprep.mubr.bf16.mxu0 0
        %714 = vmatmul.mubr.bf16.gmra.mrb[0].mxu0 %v676
        %v715 = vpop.f32.mrb[0].mxu0
        %v716 = vadd.f32 0.0, %v715
        %v717 = vpop.f32.mrb[0].mxu0
        %v718 = vpop.f32.mrb[0].mxu0
        %v719 = vpop.f32.mrb[0].mxu0
        %720 = vdwg.mxu0
        %v721 = vrcp.pop %v673
        %v722 = vmul.f32 %v716, %v721
        %s723 = scalar_lea.vmem [#allocation2], 8
        %v724 = vld [vmem:[%s723] sm:$0xf]
        %s725 = scalar_lea.vmem [#allocation2], 24
        %v726 = vld [vmem:[%s725] sm:$0xf]
        %727 = vrot.lane.b32.xlu0 %v495, 112
        %v728 = vpop.permute.xlu0 %727
        %v730 = vsel %vm506, %v728, 0
        %v733 = vsel %vm506, %v724, 0
        %735 = vmatprep.subr.bf16.mxu0 0
        %736 = vmatpush1.bf16.xpose.msra.mxu0 %v733
        %737 = vmatprep.subr.bf16.mxu0 0
        %738 = vmatpush1.bf16.xpose.msra.mxu0 0
        %739 = vmatprep.subr.bf16.mxu0 0
        %740 = vmatpush1.bf16.xpose.msra.mxu0 0
        %741 = vmatprep.subr.bf16.mxu0 0
        %742 = vmatpush1.bf16.xpose.msra.mxu0 0
        %743 = vmatprep.subr.bf16.mxu0 0
        %744 = vmatpush1.bf16.xpose.msra.mxu0 0
        %745 = vmatprep.subr.bf16.mxu0 0
        %746 = vmatpush1.bf16.xpose.msra.mxu0 0
        %747 = vmatprep.subr.bf16.mxu0 0
        %748 = vmatpush1.bf16.xpose.msra.mxu0 0
        %749 = vmatprep.subr.bf16.mxu0 0
        %750 = vmatpush1.bf16.xpose.msra.mxu0 0
        %751 = vmatprep.subr.bf16.mxu0 0
        %752 = vmatpush1.bf16.xpose.msra.mxu0 0
        %753 = vmatprep.subr.bf16.mxu0 0
        %754 = vmatpush1.bf16.xpose.msra.mxu0 0
        %755 = vmatprep.subr.bf16.mxu0 0
        %756 = vmatpush1.bf16.xpose.msra.mxu0 0
        %757 = vmatprep.subr.bf16.mxu0 0
        %758 = vmatpush1.bf16.xpose.msra.mxu0 0
        %759 = vmatprep.subr.bf16.mxu0 0
        %760 = vmatpush1.bf16.xpose.msra.mxu0 0
        %761 = vmatprep.subr.bf16.mxu0 0
        %762 = vmatpush1.bf16.xpose.msra.mxu0 0
        %763 = vmatprep.subr.bf16.mxu0 0
        %764 = vmatpush1.bf16.xpose.msra.mxu0 0
        %765 = vmatprep.subr.bf16.mxu0 0
        %766 = vmatpush1.bf16.xpose.msra.mxu0 0
        %767 = vmatprep.mubr.bf16.mxu0 0
        %768 = vmatmul.mubr.bf16.gmra.mrb[0].mxu0 %v730
        %v769 = vpop.f32.mrb[0].mxu0
        %v770 = vadd.f32 %v504, %v769
        %v771 = vpop.f32.mrb[0].mxu0
        %v772 = vpop.f32.mrb[0].mxu0
        %v773 = vpop.f32.mrb[0].mxu0
        %774 = vdwg.mxu0
        %v775 = vsel %vm506, %v770, -inf
        %776 = vmax.xlane.f32.xlu0 %v775
        %v777 = vpop.xlane.xlu0 %776
        %v778 = vsub.f32 %v770, %v777
        %v779 = vmul.f32 %v778, 1.442695
        %v780 = vpow.pop %v779
        %v781 = vsel %vm506, %v780, 0.0
        %782 = vadd.xlane.f32.xlu0 %v781
        %v783 = vpop.xlane.xlu0 %782
        %v784 = vpack.c.bf16 %v780, %v780
        %v786 = vsel %vm506, %v784, 0
        %v789 = vsel %vm566, %v726, 0
        %791 = vmatprep.subr.bf16.mxu0 0
        %792 = vmatpush1.bf16.msra.mxu0 %v789
        %793 = vmatprep.subr.bf16.mxu0 0
        %794 = vmatpush1.bf16.msra.mxu0 0
        %795 = vmatprep.subr.bf16.mxu0 0
        %796 = vmatpush1.bf16.msra.mxu0 0
        %797 = vmatprep.subr.bf16.mxu0 0
        %798 = vmatpush1.bf16.msra.mxu0 0
        %799 = vmatprep.subr.bf16.mxu0 0
        %800 = vmatpush1.bf16.msra.mxu0 0
        %801 = vmatprep.subr.bf16.mxu0 0
        %802 = vmatpush1.bf16.msra.mxu0 0
        %803 = vmatprep.subr.bf16.mxu0 0
        %804 = vmatpush1.bf16.msra.mxu0 0
        %805 = vmatprep.subr.bf16.mxu0 0
        %806 = vmatpush1.bf16.msra.mxu0 0
        %807 = vmatprep.subr.bf16.mxu0 0
        %808 = vmatpush1.bf16.msra.mxu0 0
        %809 = vmatprep.subr.bf16.mxu0 0
        %810 = vmatpush1.bf16.msra.mxu0 0
        %811 = vmatprep.subr.bf16.mxu0 0
        %812 = vmatpush1.bf16.msra.mxu0 0
        %813 = vmatprep.subr.bf16.mxu0 0
        %814 = vmatpush1.bf16.msra.mxu0 0
        %815 = vmatprep.subr.bf16.mxu0 0
        %816 = vmatpush1.bf16.msra.mxu0 0
        %817 = vmatprep.subr.bf16.mxu0 0
        %818 = vmatpush1.bf16.msra.mxu0 0
        %819 = vmatprep.subr.bf16.mxu0 0
        %820 = vmatpush1.bf16.msra.mxu0 0
        %821 = vmatprep.subr.bf16.mxu0 0
        %822 = vmatpush1.bf16.msra.mxu0 0
        %823 = vmatprep.mubr.bf16.mxu0 0
        %824 = vmatmul.mubr.bf16.gmra.mrb[0].mxu0 %v786
        %v825 = vpop.f32.mrb[0].mxu0
        %v826 = vadd.f32 0.0, %v825
        %v827 = vpop.f32.mrb[0].mxu0
        %v828 = vpop.f32.mrb[0].mxu0
        %v829 = vpop.f32.mrb[0].mxu0
        %830 = vdwg.mxu0
        %v831 = vrcp.pop %v783
        %v832 = vmul.f32 %v826, %v831
        %s833 = scalar_lea.vmem [#allocation2], 12
        %v834 = vld [vmem:[%s833] sm:$0xf]
        %s835 = scalar_lea.vmem [#allocation2], 28
        %v836 = vld [vmem:[%s835] sm:$0xf]
        %837 = vrot.lane.b32.xlu0 %v495, 104
        %v838 = vpop.permute.xlu0 %837
        %v840 = vsel %vm506, %v838, 0
        %v843 = vsel %vm506, %v834, 0
        %845 = vmatprep.subr.bf16.mxu0 0
        %846 = vmatpush1.bf16.xpose.msra.mxu0 %v843
        %847 = vmatprep.subr.bf16.mxu0 0
        %848 = vmatpush1.bf16.xpose.msra.mxu0 0
        %849 = vmatprep.subr.bf16.mxu0 0
        %850 = vmatpush1.bf16.xpose.msra.mxu0 0
        %851 = vmatprep.subr.bf16.mxu0 0
        %852 = vmatpush1.bf16.xpose.msra.mxu0 0
        %853 = vmatprep.subr.bf16.mxu0 0
        %854 = vmatpush1.bf16.xpose.msra.mxu0 0
        %855 = vmatprep.subr.bf16.mxu0 0
        %856 = vmatpush1.bf16.xpose.msra.mxu0 0
        %857 = vmatprep.subr.bf16.mxu0 0
        %858 = vmatpush1.bf16.xpose.msra.mxu0 0
        %859 = vmatprep.subr.bf16.mxu0 0
        %860 = vmatpush1.bf16.xpose.msra.mxu0 0
        %861 = vmatprep.subr.bf16.mxu0 0
        %862 = vmatpush1.bf16.xpose.msra.mxu0 0
        %863 = vmatprep.subr.bf16.mxu0 0
        %864 = vmatpush1.bf16.xpose.msra.mxu0 0
        %865 = vmatprep.subr.bf16.mxu0 0
        %866 = vmatpush1.bf16.xpose.msra.mxu0 0
        %867 = vmatprep.subr.bf16.mxu0 0
        %868 = vmatpush1.bf16.xpose.msra.mxu0 0
        %869 = vmatprep.subr.bf16.mxu0 0
        %870 = vmatpush1.bf16.xpose.msra.mxu0 0
        %871 = vmatprep.subr.bf16.mxu0 0
        %872 = vmatpush1.bf16.xpose.msra.mxu0 0
        %873 = vmatprep.subr.bf16.mxu0 0
        %874 = vmatpush1.bf16.xpose.msra.mxu0 0
        %875 = vmatprep.subr.bf16.mxu0 0
        %876 = vmatpush1.bf16.xpose.msra.mxu0 0
        %877 = vmatprep.mubr.bf16.mxu0 0
        %878 = vmatmul.mubr.bf16.gmra.mrb[0].mxu0 %v840
        %v879 = vpop.f32.mrb[0].mxu0
        %v880 = vadd.f32 %v504, %v879
        %v881 = vpop.f32.mrb[0].mxu0
        %v882 = vpop.f32.mrb[0].mxu0
        %v883 = vpop.f32.mrb[0].mxu0
        %884 = vdwg.mxu0
        %v885 = vsel %vm506, %v880, -inf
        %886 = vmax.xlane.f32.xlu0 %v885
        %v887 = vpop.xlane.xlu0 %886
        %v888 = vsub.f32 %v880, %v887
        %v889 = vmul.f32 %v888, 1.442695
        %v890 = vpow.pop %v889
        %v891 = vsel %vm506, %v890, 0.0
        %892 = vadd.xlane.f32.xlu0 %v891
        %v893 = vpop.xlane.xlu0 %892
        %v894 = vpack.c.bf16 %v890, %v890
        %v896 = vsel %vm506, %v894, 0
        %v899 = vsel %vm566, %v836, 0
        %901 = vmatprep.subr.bf16.mxu0 0
        %902 = vmatpush1.bf16.msra.mxu0 %v899
        %903 = vmatprep.subr.bf16.mxu0 0
        %904 = vmatpush1.bf16.msra.mxu0 0
        %905 = vmatprep.subr.bf16.mxu0 0
        %906 = vmatpush1.bf16.msra.mxu0 0
        %907 = vmatprep.subr.bf16.mxu0 0
        %908 = vmatpush1.bf16.msra.mxu0 0
        %909 = vmatprep.subr.bf16.mxu0 0
        %910 = vmatpush1.bf16.msra.mxu0 0
        %911 = vmatprep.subr.bf16.mxu0 0
        %912 = vmatpush1.bf16.msra.mxu0 0
        %913 = vmatprep.subr.bf16.mxu0 0
        %914 = vmatpush1.bf16.msra.mxu0 0
        %915 = vmatprep.subr.bf16.mxu0 0
        %916 = vmatpush1.bf16.msra.mxu0 0
        %917 = vmatprep.subr.bf16.mxu0 0
        %918 = vmatpush1.bf16.msra.mxu0 0
        %919 = vmatprep.subr.bf16.mxu0 0
        %920 = vmatpush1.bf16.msra.mxu0 0
        %921 = vmatprep.subr.bf16.mxu0 0
        %922 = vmatpush1.bf16.msra.mxu0 0
        %923 = vmatprep.subr.bf16.mxu0 0
        %924 = vmatpush1.bf16.msra.mxu0 0
        %925 = vmatprep.subr.bf16.mxu0 0
        %926 = vmatpush1.bf16.msra.mxu0 0
        %927 = vmatprep.subr.bf16.mxu0 0
        %928 = vmatpush1.bf16.msra.mxu0 0
        %929 = vmatprep.subr.bf16.mxu0 0
        %930 = vmatpush1.bf16.msra.mxu0 0
        %931 = vmatprep.subr.bf16.mxu0 0
        %932 = vmatpush1.bf16.msra.mxu0 0
        %933 = vmatprep.mubr.bf16.mxu0 0
        %934 = vmatmul.mubr.bf16.gmra.mrb[0].mxu0 %v896
        %v935 = vpop.f32.mrb[0].mxu0
        %v936 = vadd.f32 0.0, %v935
        %v937 = vpop.f32.mrb[0].mxu0
        %v938 = vpop.f32.mrb[0].mxu0
        %v939 = vpop.f32.mrb[0].mxu0
        %940 = vdwg.mxu0
        %v941 = vrcp.pop %v893
        %v942 = vmul.f32 %v936, %v941
        %944 = vrot.lane.b32.xlu0 %v722, 8
        %v945 = vpop.permute.xlu0 %944
        %948 = vrot.lane.b32.xlu0 %v832, 16
        %v949 = vpop.permute.xlu0 %948
        %952 = vrot.lane.b32.xlu0 %v942, 24
        %v953 = vpop.permute.xlu0 %952
        %v955 = vsel %vm506, %v611, %v945
        %vm956 = vcmask 130048
        %v957 = vsel %vm956, %v955, %v949
        %vm958 = vcmask 195584
        %v959 = vsel %vm958, %v957, %v953
        %960 = vst.msk [vmem:[%s303] sm:$0xff] %vm450, %v959
        %s961 = sand.u32 %s180, 1
        %s962 = scalar_lea.sflag [#allocation5], %s961
        %s963 = sand.u32 %s180, 1
        %s964 = smul.addr %s963, 8
        %s965 = scalar_lea.vmem [#allocation9], %s964
        // Predicated region
        $region61: #{tpu_custom_call.1} parent=43 // pred_check
          %p966 = pneg %p190
        $region62: #{tpu_custom_call.1} parent=43 // pred_check_branch
          %968 = sbr.rel (%p966) target = $region64
        $region63: #{tpu_custom_call.1} parent=43 // pred_region
          %s970 = ssub.s32 128, 128
          %971 = vsyncadd %s962, %s970
          %s972 = sadd.s32 %s27, %s26
          %s973 = smul.addr %s972, 128
          %s974 = scalar_lea.hbm %s6, %s973
          %s976 = sshll.u32 %s965, 4
          %s977 = int_to_ptr.vmem [resolvable:$true] %s976
          %979 = dma.vmem_to_hbm [thread:$0]  %s977, 128, %s974, %s962
        $region64: #{tpu_custom_call.1} parent=43 // pred_fallthru
          _
      $region44: #{tpu_custom_call.1} parent=5 // pred_fallthru
        _
      %p980 = scmp.le.s32.totalorder 2, %s17
      // Predicated region
      $region65: #{tpu_custom_call.1} parent=5 // pred_check
        %p981 = pneg %p980
      $region66: #{tpu_custom_call.1} parent=5 // pred_check_branch
        %983 = sbr.rel (%p981) target = $region68
      $region67: #{tpu_custom_call.1} parent=5 // pred_region
        %s984 = ssub.s32 %s17, 2
        // Predicated region
        $region69: #{tpu_custom_call.1} parent=67 // pred_check
          %p985 = pneg %p196
        $region70: #{tpu_custom_call.1} parent=67 // pred_check_branch
          %987 = sbr.rel (%p985) target = $region72
        $region71: #{tpu_custom_call.1} parent=67 // pred_region
          %s988 = sand.u32 %s181, 1
          %s989 = scalar_lea.sflag [#allocation5], %s988
          %s990 = sand.u32 %s181, 1
          %s991 = smul.addr %s990, 8
          %s992 = scalar_lea.vmem [#allocation9], %s991
          %993 = dma.done %s989, 128
        $region72: #{tpu_custom_call.1} parent=67 // pred_fallthru
          _
      $region68: #{tpu_custom_call.1} parent=5 // pred_fallthru
        _
    $region6: #{tpu_custom_call.1} parent=1 // loop_footer
      %s21 = sadd.s32 1, %s17
    $region7: #{tpu_custom_call.1} parent=1 // loop_footer_branch
      %16 = sbr.rel target = $region3
    $region8: #{tpu_custom_call.1} parent=1 // loop_exit
      _
    %994 = vsyncpa [#allocation4], 1
    %s995 = scalar_lea.sflag [#allocation4], 1
    %996 = vsyncpa %s995, 1
    %997 = vsyncpa [#allocation7], 1
    %998 = vsyncpa [#allocation5], 1
    %s999 = scalar_lea.sflag [#allocation5], 1
    %1000 = vsyncpa %s999, 1

// kernel: tpu_custom_call.1
$region0: #{tpu_custom_call.1}
  #allocation0 [shape = 'u32[]', space=smem, size = 0x4, offset = 0x4, fixed_abs, tag = 'smem constant byte address 0x4 - core index']
  #allocation1 [shape = 'u32[144,128]{1,0:T(1,128)}', space=vmem, size = 0x12000, scoped, tag = 'internal scratch']
  #allocation2 [shape = 'bf16[2,4,8,8]{3,2,1,0:T(8,128)(2,1)}', space=vmem, size = 0x4000, scoped, tag = 'scratch operand']
  %s0 = inlined_call_operand.hbm [shape: bf16[2,8,32], index: 0, kind: input, shape index: {}]
  %s1 = inlined_call_operand.vmem [shape: f32[2,1,8], index: 1, kind: input, shape index: {}]
  %s2 = inlined_call_operand.hbm [shape: bf16[32,32], index: 2, kind: input, shape index: {}]
  %s3 = inlined_call_operand.hbm [shape: bf16[32,64], index: 3, kind: input, shape index: {}]
  %s4 = inlined_call_operand.vmem [shape: f32[1,32], index: 4, kind: input, shape index: {}]
  %s5 = inlined_call_operand.vmem [shape: f32[1,64], index: 5, kind: input, shape index: {}]
  %s6 = inlined_call_operand.hbm [shape: f32[2,8,32], index: 6, kind: output, shape index: {}]
  %s7 = sld [smem:[#allocation0]]
  $region73: #{tpu_custom_call.1} parent=0
    _
  %s9 = ssub.s32 1, %s7
  %s10 = scalar_select 0, %s9, %s7
  $region1: #{tpu_custom_call.1} parent=0
    #allocation3 [shape = 'u8[4096]{0}', space=vmem, size = 0x1000, scoped, tag = 'input window, operand 0']
    #allocation4 [shape = 's32[2]{0}', space=sflag, size = 0x8, scoped, tag = 'scoped memory for tpu_custom_call.1']
    #allocation5 [shape = 's32[2]{0}', space=sflag, size = 0x8, scoped, tag = 'scoped memory for tpu_custom_call.1']
    #allocation6 [shape = 'u8[8192]{0}', space=vmem, size = 0x2000, scoped, tag = 'input window, operand 2, single buffered']
    #allocation7 [shape = 's32[1]{0}', space=sflag, size = 0x4, scoped, tag = 'scoped memory for tpu_custom_call.1']
    #allocation8 [shape = 'u8[8192]{0}', space=vmem, size = 0x2000, scoped, tag = 'input window, operand 3, single buffered']
    #allocation9 [shape = 'u8[8192]{0}', space=vmem, size = 0x2000, scoped, tag = 'output window, operand 0']
    %11 = vsyncpa [#allocation4], 0
    %s12 = scalar_lea.sflag [#allocation4], 1
    %13 = vsyncpa %s12, 0
    %14 = vsyncpa [#allocation7], 0
    %15 = vsyncpa [#allocation5], 0
    %s16 = scalar_lea.sflag [#allocation5], 1
    %17 = vsyncpa %s16, 0
    loop: start=0, step=1, limit=4
    $region2: #{tpu_custom_call.1} parent=1 // loop_pre_header
      _
    $region3: #{tpu_custom_call.1} parent=1 // loop_header
      %s19 = sphi 0, %s23
      %p20 = scmp.ge.s32.totalorder %s19, 4
      %s26 = sphi 0, %s38
      %s27 = sphi 0, %s34
      %s28 = sphi 0, %s26
      %s29 = sphi 0, %s27
      %s30 = sphi 0, %s28
      %s31 = sphi 0, %s29
      %s41 = sphi 0, %s43
      %s44 = sphi 0, %s41
      %s45 = sphi 0, %s44
      %s61 = sphi 0, %s45
      %s67 = sphi 0, %s69
      %s70 = sphi 0, %s67
      %s71 = sphi 0, %s70
      %s87 = sphi 0, %s71
      %s91 = sphi 0, %s91
      %s93 = sphi 0, %s91
      %s94 = sphi 0, %s93
      %s108 = sphi 0, %s94
      %s112 = sphi 0, %s112
      %s114 = sphi 0, %s112
      %s115 = sphi 0, %s114
      %s129 = sphi 0, %s115
      %s133 = sphi 0, %s133
      %s135 = sphi 0, %s133
      %s136 = sphi 0, %s135
      %s150 = sphi 0, %s136
      %s154 = sphi 0, %s154
      %s156 = sphi 0, %s154
      %s157 = sphi 0, %s156
      %s171 = sphi 0, %s157
      %s179 = sphi 0, %s181
      %s182 = sphi 0, %s179
      %s183 = sphi 0, %s182
      %s199 = sphi 0, %s183
    $region4: #{tpu_custom_call.1} parent=1 // loop_header_branch
      %22 = sbr.rel (%p20) target = $region8
    $region5: #{tpu_custom_call.1} parent=1 // loop_body
      %s24 = ssub.s32 %s19, 1
      %s25 = ssub.s32 %s19, 2
      %s32 = sadd.s32 1, %s27
      %p33 = scmp.ge.s32.totalorder %s32, 1
      %s34 = scalar_select %p33, 0, %s32
      %s35 = sadd.s32 1, %s26
      %s36 = scalar_select %p33, %s35, %s26
      %p37 = scmp.ge.s32.totalorder %s36, 2
      %s38 = scalar_select %p37, 0, %s36
      %s39 = ssub.s32 %s26, %s38
      %p40 = scmp.eq.s32.totalorder %s39, 0
      %s42 = sadd.s32 %s41, 1
      %s43 = scalar_select %p40, %s41, %s42
      %p46 = pneg %p40
      %p47 = scmp.eq.s32.totalorder %s19, 1
      %p48 = por %p46, %p47
      %p49 = scmp.ne.s32.totalorder %s41, %s44
      %p50 = scmp.eq.s32.totalorder %s19, 0
      %p51 = por %p49, %p50
      %p52 = scmp.ne.s32.totalorder %s41, %s44
      %p53 = scmp.eq.s32.totalorder %s24, 1
      %p54 = por %p52, %p53
      %p55 = scmp.ne.s32.totalorder %s44, %s45
      %p56 = scmp.eq.s32.totalorder %s24, 0
      %p57 = por %p55, %p56
      %p58 = scmp.ne.s32.totalorder %s44, %s45
      %p59 = scmp.eq.s32.totalorder %s25, 1
      %p60 = por %p58, %p59
      %p62 = scmp.ne.s32.totalorder %s45, %s61
      %p63 = scmp.eq.s32.totalorder %s25, 0
      %p64 = por %p62, %p63
      %s65 = ssub.s32 %s26, %s38
      %p66 = scmp.eq.s32.totalorder %s65, 0
      %s68 = sadd.s32 %s67, 1
      %s69 = scalar_select %p66, %s67, %s68
      %p72 = pneg %p66
      %p73 = scmp.eq.s32.totalorder %s19, 1
      %p74 = por %p72, %p73
      %p75 = scmp.ne.s32.totalorder %s67, %s70
      %p76 = scmp.eq.s32.totalorder %s19, 0
      %p77 = por %p75, %p76
      %p78 = scmp.ne.s32.totalorder %s67, %s70
      %p79 = scmp.eq.s32.totalorder %s24, 1
      %p80 = por %p78, %p79
      %p81 = scmp.ne.s32.totalorder %s70, %s71
      %p82 = scmp.eq.s32.totalorder %s24, 0
      %p83 = por %p81, %p82
      %p84 = scmp.ne.s32.totalorder %s70, %s71
      %p85 = scmp.eq.s32.totalorder %s25, 1
      %p86 = por %p84, %p85
      %p88 = scmp.ne.s32.totalorder %s71, %s87
      %p89 = scmp.eq.s32.totalorder %s25, 0
      %p90 = por %p88, %p89
      %s92 = sadd.s32 %s91, 1
      %p95 = scmp.eq.s32.totalorder %s19, 1
      %p96 = scmp.ne.s32.totalorder %s91, %s93
      %p97 = scmp.eq.s32.totalorder %s19, 0
      %p98 = por %p96, %p97
      %p99 = scmp.ne.s32.totalorder %s91, %s93
      %p100 = scmp.eq.s32.totalorder %s24, 1
      %p101 = por %p99, %p100
      %p102 = scmp.ne.s32.totalorder %s93, %s94
      %p103 = scmp.eq.s32.totalorder %s24, 0
      %p104 = por %p102, %p103
      %p105 = scmp.ne.s32.totalorder %s93, %s94
      %p106 = scmp.eq.s32.totalorder %s25, 1
      %p107 = por %p105, %p106
      %p109 = scmp.ne.s32.totalorder %s94, %s108
      %p110 = scmp.eq.s32.totalorder %s25, 0
      %p111 = por %p109, %p110
      %s113 = sadd.s32 %s112, 1
      %p116 = scmp.eq.s32.totalorder %s19, 1
      %p117 = scmp.ne.s32.totalorder %s112, %s114
      %p118 = scmp.eq.s32.totalorder %s19, 0
      %p119 = por %p117, %p118
      %p120 = scmp.ne.s32.totalorder %s112, %s114
      %p121 = scmp.eq.s32.totalorder %s24, 1
      %p122 = por %p120, %p121
      %p123 = scmp.ne.s32.totalorder %s114, %s115
      %p124 = scmp.eq.s32.totalorder %s24, 0
      %p125 = por %p123, %p124
      %p126 = scmp.ne.s32.totalorder %s114, %s115
      %p127 = scmp.eq.s32.totalorder %s25, 1
      %p128 = por %p126, %p127
      %p130 = scmp.ne.s32.totalorder %s115, %s129
      %p131 = scmp.eq.s32.totalorder %s25, 0
      %p132 = por %p130, %p131
      %s134 = sadd.s32 %s133, 1
      %p137 = scmp.eq.s32.totalorder %s19, 1
      %p138 = scmp.ne.s32.totalorder %s133, %s135
      %p139 = scmp.eq.s32.totalorder %s19, 0
      %p140 = por %p138, %p139
      %p141 = scmp.ne.s32.totalorder %s133, %s135
      %p142 = scmp.eq.s32.totalorder %s24, 1
      %p143 = por %p141, %p142
      %p144 = scmp.ne.s32.totalorder %s135, %s136
      %p145 = scmp.eq.s32.totalorder %s24, 0
      %p146 = por %p144, %p145
      %p147 = scmp.ne.s32.totalorder %s135, %s136
      %p148 = scmp.eq.s32.totalorder %s25, 1
      %p149 = por %p147, %p148
      %p151 = scmp.ne.s32.totalorder %s136, %s150
      %p152 = scmp.eq.s32.totalorder %s25, 0
      %p153 = por %p151, %p152
      %s155 = sadd.s32 %s154, 1
      %p158 = scmp.eq.s32.totalorder %s19, 1
      %p159 = scmp.ne.s32.totalorder %s154, %s156
      %p160 = scmp.eq.s32.totalorder %s19, 0
      %p161 = por %p159, %p160
      %p162 = scmp.ne.s32.totalorder %s154, %s156
      %p163 = scmp.eq.s32.totalorder %s24, 1
      %p164 = por %p162, %p163
      %p165 = scmp.ne.s32.totalorder %s156, %s157
      %p166 = scmp.eq.s32.totalorder %s24, 0
      %p167 = por %p165, %p166
      %p168 = scmp.ne.s32.totalorder %s156, %s157
      %p169 = scmp.eq.s32.totalorder %s25, 1
      %p170 = por %p168, %p169
      %p172 = scmp.ne.s32.totalorder %s157, %s171
      %p173 = scmp.eq.s32.totalorder %s25, 0
      %p174 = por %p172, %p173
      %s175 = ssub.s32 %s26, %s38
      %s176 = ssub.s32 %s27, %s34
      %s177 = sor.u32 %s175, %s176
      %p178 = scmp.eq.s32.totalorder %s177, 0
      %s180 = sadd.s32 %s179, 1
      %s181 = scalar_select %p178, %s179, %s180
      %p184 = pneg %p178
      %p185 = scmp.eq.s32.totalorder %s19, 1
      %p186 = por %p184, %p185
      %p187 = scmp.ne.s32.totalorder %s179, %s182
      %p188 = scmp.eq.s32.totalorder %s19, 0
      %p189 = por %p187, %p188
      %p190 = scmp.ne.s32.totalorder %s179, %s182
      %p191 = scmp.eq.s32.totalorder %s24, 1
      %p192 = por %p190, %p191
      %p193 = scmp.ne.s32.totalorder %s182, %s183
      %p194 = scmp.eq.s32.totalorder %s24, 0
      %p195 = por %p193, %p194
      %p196 = scmp.ne.s32.totalorder %s182, %s183
      %p197 = scmp.eq.s32.totalorder %s25, 1
      %p198 = por %p196, %p197
      %p200 = scmp.ne.s32.totalorder %s183, %s199
      %p201 = scmp.eq.s32.totalorder %s25, 0
      %p202 = por %p200, %p201
      %p203 = scmp.le.s32.totalorder 1, %s19
      %p204 = scmp.lt.s32.totalorder %s19, 3
      %p205 = pnand %p203, %p204
      %p206 = pneg %p205
      // Predicated region
      $region9: #{tpu_custom_call.1} parent=5 // pred_check
        _
      $region10: #{tpu_custom_call.1} parent=5 // pred_check_branch
        %208 = sbr.rel (%p205) target = $region12
      $region11: #{tpu_custom_call.1} parent=5 // pred_region
        %s209 = ssub.s32 %s19, 1
        // Predicated region
        $region13: #{tpu_custom_call.1} parent=11 // pred_check
          %p210 = pneg %p104
        $region14: #{tpu_custom_call.1} parent=11 // pred_check_branch
          %212 = sbr.rel (%p210) target = $region16
        $region15: #{tpu_custom_call.1} parent=11 // pred_region
          %s214 = ssub.s32 256, 256
          %215 = vsyncadd [#allocation7], %s214
          %s216 = sshll.u32 [#allocation6], 4
          %s217 = int_to_ptr.vmem [resolvable:$true] %s216
          %222 = dma.hbm_to_vmem [thread:$0]  %s2, 256, %s217, [#allocation7], 64, 64, 4
        $region16: #{tpu_custom_call.1} parent=11 // pred_fallthru
          _
        // Predicated region
        $region17: #{tpu_custom_call.1} parent=11 // pred_check
          %p223 = pneg %p125
        $region18: #{tpu_custom_call.1} parent=11 // pred_check_branch
          %225 = sbr.rel (%p223) target = $region20
        $region19: #{tpu_custom_call.1} parent=11 // pred_region
          %s227 = ssub.s32 256, 256
          %228 = vsyncadd [#allocation7], %s227
          %s229 = sshll.u32 [#allocation8], 4
          %s230 = int_to_ptr.vmem [resolvable:$true] %s229
          %235 = dma.hbm_to_vmem [thread:$0]  %s3, 256, %s230, [#allocation7], 64, 64, 4
        $region20: #{tpu_custom_call.1} parent=11 // pred_fallthru
          _
        // Predicated region
        $region21: #{tpu_custom_call.1} parent=11 // pred_check
          %p236 = pneg %p146
        $region22: #{tpu_custom_call.1} parent=11 // pred_check_branch
          %238 = sbr.rel (%p236) target = $region24
        $region23: #{tpu_custom_call.1} parent=11 // pred_region
          _
        $region24: #{tpu_custom_call.1} parent=11 // pred_fallthru
          _
        // Predicated region
        $region25: #{tpu_custom_call.1} parent=11 // pred_check
          %p239 = pneg %p167
        $region26: #{tpu_custom_call.1} parent=11 // pred_check_branch
          %241 = sbr.rel (%p239) target = $region28
        $region27: #{tpu_custom_call.1} parent=11 // pred_region
          _
        $region28: #{tpu_custom_call.1} parent=11 // pred_fallthru
          _
      $region12: #{tpu_custom_call.1} parent=5 // pred_fallthru
        _
      %p242 = scmp.lt.s32.totalorder %s19, 2
      // Predicated region
      $region29: #{tpu_custom_call.1} parent=5 // pred_check
        %p243 = pneg %p242
      $region30: #{tpu_custom_call.1} parent=5 // pred_check_branch
        %245 = sbr.rel (%p243) target = $region32
      $region31: #{tpu_custom_call.1} parent=5 // pred_region
        // Predicated region
        $region33: #{tpu_custom_call.1} parent=31 // pred_check
          %p246 = pneg %p51
        $region34: #{tpu_custom_call.1} parent=31 // pred_check_branch
          %248 = sbr.rel (%p246) target = $region36
        $region35: #{tpu_custom_call.1} parent=31 // pred_region
          %s249 = sand.u32 %s41, 1
          %s250 = scalar_lea.sflag [#allocation4], %s249
          %s251 = sand.u32 %s41, 1
          %s252 = smul.addr %s251, 4
          %s253 = scalar_lea.vmem [#allocation3], %s252
          %s255 = ssub.s32 64, 64
          %256 = vsyncadd %s250, %s255
          %s257 = smul.addr %s26, 64
          %s258 = scalar_lea.hbm %s0, %s257
          %s260 = sshll.u32 %s253, 4
          %s261 = int_to_ptr.vmem [resolvable:$true] %s260
          %263 = dma.hbm_to_vmem [thread:$0]  %s258, 64, %s261, %s250
        $region36: #{tpu_custom_call.1} parent=31 // pred_fallthru
          _
        // Predicated region
        $region37: #{tpu_custom_call.1} parent=31 // pred_check
          %p264 = pneg %p77
        $region38: #{tpu_custom_call.1} parent=31 // pred_check_branch
          %266 = sbr.rel (%p264) target = $region40
        $region39: #{tpu_custom_call.1} parent=31 // pred_region
          %p267 = scmp.lt.s32.totalorder %s26, 1
          %s268 = scalar_select %p267, %s26, 1
          %s269 = scalar_lea.vmem %s1, %s268
        $region40: #{tpu_custom_call.1} parent=31 // pred_fallthru
          _
      $region32: #{tpu_custom_call.1} parent=5 // pred_fallthru
        _
      %p270 = scmp.le.s32.totalorder 1, %s19
      %p271 = scmp.lt.s32.totalorder %s19, 3
      %p272 = pnand %p270, %p271
      %p273 = pneg %p272
      // Predicated region
      $region41: #{tpu_custom_call.1} parent=5 // pred_check
        _
      $region42: #{tpu_custom_call.1} parent=5 // pred_check_branch
        %275 = sbr.rel (%p272) target = $region44
      $region43: #{tpu_custom_call.1} parent=5 // pred_region
        %s276 = ssub.s32 %s19, 1
        %s277 = sand.u32 %s44, 1
        %s278 = scalar_lea.sflag [#allocation4], %s277
        %s279 = sand.u32 %s44, 1
        %s280 = smul.addr %s279, 4
        %s281 = scalar_lea.vmem [#allocation3], %s280
        // Predicated region
        $region45: #{tpu_custom_call.1} parent=43 // pred_check
          %p282 = pneg %p57
        $region46: #{tpu_custom_call.1} parent=43 // pred_check_branch
          %284 = sbr.rel (%p282) target = $region48
        $region47: #{tpu_custom_call.1} parent=43 // pred_region
          %285 = dma.done %s278, 64
        $region48: #{tpu_custom_call.1} parent=43 // pred_fallthru
          _
        // Predicated region
        $region49: #{tpu_custom_call.1} parent=43 // pred_check
          %p286 = pneg %p104
        $region50: #{tpu_custom_call.1} parent=43 // pred_check_branch
          %288 = sbr.rel (%p286) target = $region52
        $region51: #{tpu_custom_call.1} parent=43 // pred_region
          %289 = dma.done [#allocation7], 256
        $region52: #{tpu_custom_call.1} parent=43 // pred_fallthru
          _
        // Predicated region
        $region53: #{tpu_custom_call.1} parent=43 // pred_check
          %p290 = pneg %p125
        $region54: #{tpu_custom_call.1} parent=43 // pred_check_branch
          %292 = sbr.rel (%p290) target = $region56
        $region55: #{tpu_custom_call.1} parent=43 // pred_region
          %293 = dma.done [#allocation7], 256
        $region56: #{tpu_custom_call.1} parent=43 // pred_fallthru
          _
        %s294 = sand.u32 %s44, 1
        %s295 = scalar_lea.sflag [#allocation4], %s294
        %s296 = sand.u32 %s44, 1
        %s297 = smul.addr %s296, 4
        %s298 = scalar_lea.vmem [#allocation3], %s297
        %p299 = pneg %p57
        %p300 = pneg %p54
        %p301 = scmp.lt.s32.totalorder %s28, 1
        %s302 = scalar_select %p301, %s28, 1
        %s303 = scalar_lea.vmem %s1, %s302
        %p304 = pneg %p83
        %p305 = pneg %p80
        %p306 = pneg %p104
        %p307 = pneg %p101
        %p308 = pneg %p125
        %p309 = pneg %p122
        %p310 = pneg %p146
        %p311 = pneg %p143
        %p312 = pneg %p167
        %p313 = pneg %p164
        %p314 = pneg %p195
        %p315 = pneg %p192
        %s316 = sand.u32 %s182, 1
        %s317 = scalar_lea.sflag [#allocation5], %s316
        %s318 = sand.u32 %s182, 1
        %s319 = smul.addr %s318, 8
        %s320 = scalar_lea.vmem [#allocation9], %s319
        %p321 = scmp.lt.s32.totalorder %s28, 1
        %s322 = scalar_select %p321, %s28, 1
        %s323 = scalar_lea.vmem %s1, %s322
        %p325 = scmp.eq.s32.totalorder %s29, 0
        // Predicated region
        $region57: #{tpu_custom_call.1} parent=43 // pred_check
          %p326 = pneg %p325
        $region58: #{tpu_custom_call.1} parent=43 // pred_check_branch
          %328 = sbr.rel (%p326) target = $region60
        $region59: #{tpu_custom_call.1} parent=43 // pred_region
          %v329 = vld [vmem:[%s281] sm:$0xf]
          %v330 = vld [vmem:[#allocation8] sm:$0xf]
          %v331 = vld [vmem:[#allocation8 + $0x4] sm:$0xf]
          %v332 = vld [vmem:[#allocation8 + $0x8] sm:$0xf]
          %v333 = vld [vmem:[#allocation8 + $0xc] sm:$0xf]
          %v334 = vld [vmem:[%s5] sm:$0x1]
          %v336 = vlaneseq
          %v337 = vshrl.u32 %v336, 7
          %v338 = vsub.s32 0, %v337
          %v339 = vrot.slane %v334, %v338
          %v345 = vunpack.c.l.b16 %v330
          %v346 = vunpack.c.l.b16 %v331
          %v347 = vunpack.c.l.b16 %v332
          %v348 = vunpack.c.l.b16 %v333
          %v349 = vpack.c.b16 %v346, %v345
          %v350 = vpack.c.b16 %v348, %v347
          %vm353 = vcmask 261120
          %v355 = vsel %vm353, %v329, 0
          %357 = vmatprep.subr.bf16.mxu0 0
          %358 = vmatpush1.bf16.msra.mxu0 %v349
          %359 = vmatprep.subr.bf16.mxu0 0
          %360 = vmatpush1.bf16.msra.mxu0 %v350
          %361 = vmatprep.subr.bf16.mxu0 0
          %362 = vmatpush1.bf16.msra.mxu0 0
          %363 = vmatprep.subr.bf16.mxu0 0
          %364 = vmatpush1.bf16.msra.mxu0 0
          %365 = vmatprep.subr.bf16.mxu0 0
          %366 = vmatpush1.bf16.msra.mxu0 0
          %367 = vmatprep.subr.bf16.mxu0 0
          %368 = vmatpush1.bf16.msra.mxu0 0
          %369 = vmatprep.subr.bf16.mxu0 0
          %370 = vmatpush1.bf16.msra.mxu0 0
          %371 = vmatprep.subr.bf16.mxu0 0
          %372 = vmatpush1.bf16.msra.mxu0 0
          %373 = vmatprep.subr.bf16.mxu0 0
          %374 = vmatpush1.bf16.msra.mxu0 0
          %375 = vmatprep.subr.bf16.mxu0 0
          %376 = vmatpush1.bf16.msra.mxu0 0
          %377 = vmatprep.subr.bf16.mxu0 0
          %378 = vmatpush1.bf16.msra.mxu0 0
          %379 = vmatprep.subr.bf16.mxu0 0
          %380 = vmatpush1.bf16.msra.mxu0 0
          %381 = vmatprep.subr.bf16.mxu0 0
          %382 = vmatpush1.bf16.msra.mxu0 0
          %383 = vmatprep.subr.bf16.mxu0 0
          %384 = vmatpush1.bf16.msra.mxu0 0
          %385 = vmatprep.subr.bf16.mxu0 0
          %386 = vmatpush1.bf16.msra.mxu0 0
          %387 = vmatprep.subr.bf16.mxu0 0
          %388 = vmatpush1.bf16.msra.mxu0 0
          %389 = vmatprep.mubr.bf16.mxu0 0
          %390 = vmatmul.mubr.bf16.gmra.mrb[0].mxu0 %v355
          %v391 = vpop.f32.mrb[0].mxu0
          %v392 = vadd.f32 %v339, %v391
          %v393 = vpop.f32.mrb[0].mxu0
          %v394 = vpop.f32.mrb[0].mxu0
          %v395 = vpop.f32.mrb[0].mxu0
          %396 = vdwg.mxu0
          %v397 = vpack.c.bf16 %v392, %v392
          %vm398 = vcmask 60416
          %399 = vst.msk [vmem:[#allocation2] sm:$0xf] %vm398, %v397
          %v401 = vunpack.c.l.b16 %v397
          %v402 = vpack.c.b16 %v401, %v401
          %403 = vrot.lane.b32.xlu0 %v402, 96
          %v404 = vpop.permute.xlu0 %403
          %s406 = scalar_lea.vmem [#allocation2], 16
          %407 = vst.msk [vmem:[%s406] sm:$0xf] %vm398, %v404
          %408 = vrot.lane.b32.xlu0 %v402, 120
          %v409 = vpop.permute.xlu0 %408
          %s411 = scalar_lea.vmem [#allocation2], 4
          %412 = vst.msk [vmem:[%s411] sm:$0xf] %vm398, %v409
          %413 = vrot.lane.b32.xlu0 %v402, 88
          %v414 = vpop.permute.xlu0 %413
          %s416 = scalar_lea.vmem [#allocation2], 20
          %417 = vst.msk [vmem:[%s416] sm:$0xf] %vm398, %v414
          %418 = vrot.lane.b32.xlu0 %v402, 112
          %v419 = vpop.permute.xlu0 %418
          %s421 = scalar_lea.vmem [#allocation2], 8
          %422 = vst.msk [vmem:[%s421] sm:$0xf] %vm398, %v419
          %423 = vrot.lane.b32.xlu0 %v402, 80
          %v424 = vpop.permute.xlu0 %423
          %s426 = scalar_lea.vmem [#allocation2], 24
          %427 = vst.msk [vmem:[%s426] sm:$0xf] %vm398, %v424
          %428 = vrot.lane.b32.xlu0 %v402, 104
          %v429 = vpop.permute.xlu0 %428
          %s431 = scalar_lea.vmem [#allocation2], 12
          %432 = vst.msk [vmem:[%s431] sm:$0xf] %vm398, %v429
          %433 = vrot.lane.b32.xlu0 %v402, 72
          %v434 = vpop.permute.xlu0 %433
          %s436 = scalar_lea.vmem [#allocation2], 28
          %437 = vst.msk [vmem:[%s436] sm:$0xf] %vm398, %v434
        $region60: #{tpu_custom_call.1} parent=43 // pred_fallthru
          _
        %s438 = smul.u32 %s29, 8
        %s439 = sshra.s32 %s438, 3
        %s440 = sand.u32 %s438, 7
        %s441 = smul.addr %s439, 4
        %s442 = scalar_lea.vmem %s281, %s441 [#allocation3]
        %v443 = vld [vmem:[%s442] sm:$0xf]
        %v444 = vld [vmem:[#allocation6] sm:$0xf]
        %v445 = vld [vmem:[#allocation6 + $0x4] sm:$0xf]
        %v446 = vld [vmem:[#allocation6 + $0x8] sm:$0xf]
        %v447 = vld [vmem:[#allocation6 + $0xc] sm:$0xf]
        %v448 = vld [vmem:[%s4] sm:$0x1]
        %v450 = vlaneseq
        %v451 = vshrl.u32 %v450, 7
        %v452 = vsub.s32 0, %v451
        %v453 = vrot.slane %v448, %v452
        %v459 = vunpack.c.l.b16 %v444
        %v460 = vunpack.c.l.b16 %v445
        %v461 = vunpack.c.l.b16 %v446
        %v462 = vunpack.c.l.b16 %v447
        %v463 = vpack.c.b16 %v460, %v459
        %v464 = vpack.c.b16 %v462, %v461
        %vm467 = vcmask 261120
        %v469 = vsel %vm467, %v443, 0
        %471 = vmatprep.subr.bf16.mxu0 0
        %472 = vmatpush1.bf16.msra.mxu0 %v463
        %473 = vmatprep.subr.bf16.mxu0 0
        %474 = vmatpush1.bf16.msra.mxu0 %v464
        %475 = vmatprep.subr.bf16.mxu0 0
        %476 = vmatpush1.bf16.msra.mxu0 0
        %477 = vmatprep.subr.bf16.mxu0 0
        %478 = vmatpush1.bf16.msra.mxu0 0
        %479 = vmatprep.subr.bf16.mxu0 0
        %480 = vmatpush1.bf16.msra.mxu0 0
        %481 = vmatprep.subr.bf16.mxu0 0
        %482 = vmatpush1.bf16.msra.mxu0 0
        %483 = vmatprep.subr.bf16.mxu0 0
        %484 = vmatpush1.bf16.msra.mxu0 0
        %485 = vmatprep.subr.bf16.mxu0 0
        %486 = vmatpush1.bf16.msra.mxu0 0
        %487 = vmatprep.subr.bf16.mxu0 0
        %488 = vmatpush1.bf16.msra.mxu0 0
        %489 = vmatprep.subr.bf16.mxu0 0
        %490 = vmatpush1.bf16.msra.mxu0 0
        %491 = vmatprep.subr.bf16.mxu0 0
        %492 = vmatpush1.bf16.msra.mxu0 0
        %493 = vmatprep.subr.bf16.mxu0 0
        %494 = vmatpush1.bf16.msra.mxu0 0
        %495 = vmatprep.subr.bf16.mxu0 0
        %496 = vmatpush1.bf16.msra.mxu0 0
        %497 = vmatprep.subr.bf16.mxu0 0
        %498 = vmatpush1.bf16.msra.mxu0 0
        %499 = vmatprep.subr.bf16.mxu0 0
        %500 = vmatpush1.bf16.msra.mxu0 0
        %501 = vmatprep.subr.bf16.mxu0 0
        %502 = vmatpush1.bf16.msra.mxu0 0
        %503 = vmatprep.mubr.bf16.mxu0 0
        %504 = vmatmul.mubr.bf16.gmra.mrb[0].mxu0 %v469
        %v505 = vpop.f32.mrb[0].mxu0
        %v506 = vadd.f32 %v453, %v505
        %v507 = vpop.f32.mrb[0].mxu0
        %v508 = vpop.f32.mrb[0].mxu0
        %v509 = vpop.f32.mrb[0].mxu0
        %510 = vdwg.mxu0
        %v511 = vmul.f32 %v506, 0.35355338
        %v512 = vpack.c.bf16 %v511, %v511
        %v513 = vld [vmem:[%s323] sm:$0x1]
        %v514 = vld [vmem:[#allocation2] sm:$0xf]
        %s515 = scalar_lea.vmem [#allocation2], 16
        %v516 = vld [vmem:[%s515] sm:$0xf]
        %v518 = vlaneseq
        %v519 = vshrl.u32 %v518, 7
        %v520 = vsub.s32 0, %v519
        %v521 = vrot.slane %v513, %v520
        %vm523 = vcmask 64512
        %v525 = vsel %vm523, %v512, 0
        %v528 = vsel %vm523, %v514, 0
        %530 = vmatprep.subr.bf16.mxu0 0
        %531 = vmatpush1.bf16.xpose.msra.mxu0 %v528
        %532 = vmatprep.subr.bf16.mxu0 0
        %533 = vmatpush1.bf16.xpose.msra.mxu0 0
        %534 = vmatprep.subr.bf16.mxu0 0
        %535 = vmatpush1.bf16.xpose.msra.mxu0 0
        %536 = vmatprep.subr.bf16.mxu0 0
        %537 = vmatpush1.bf16.xpose.msra.mxu0 0
        %538 = vmatprep.subr.bf16.mxu0 0
        %539 = vmatpush1.bf16.xpose.msra.mxu0 0
        %540 = vmatprep.subr.bf16.mxu0 0
        %541 = vmatpush1.bf16.xpose.msra.mxu0 0
        %542 = vmatprep.subr.bf16.mxu0 0
        %543 = vmatpush1.bf16.xpose.msra.mxu0 0
        %544 = vmatprep.subr.bf16.mxu0 0
        %545 = vmatpush1.bf16.xpose.msra.mxu0 0
        %546 = vmatprep.subr.bf16.mxu0 0
        %547 = vmatpush1.bf16.xpose.msra.mxu0 0
        %548 = vmatprep.subr.bf16.mxu0 0
        %549 = vmatpush1.bf16.xpose.msra.mxu0 0
        %550 = vmatprep.subr.bf16.mxu0 0
        %551 = vmatpush1.bf16.xpose.msra.mxu0 0
        %552 = vmatprep.subr.bf16.mxu0 0
        %553 = vmatpush1.bf16.xpose.msra.mxu0 0
        %554 = vmatprep.subr.bf16.mxu0 0
        %555 = vmatpush1.bf16.xpose.msra.mxu0 0
        %556 = vmatprep.subr.bf16.mxu0 0
        %557 = vmatpush1.bf16.xpose.msra.mxu0 0
        %558 = vmatprep.subr.bf16.mxu0 0
        %559 = vmatpush1.bf16.xpose.msra.mxu0 0
        %560 = vmatprep.subr.bf16.mxu0 0
        %561 = vmatpush1.bf16.xpose.msra.mxu0 0
        %562 = vmatprep.mubr.bf16.mxu0 0
        %563 = vmatmul.mubr.bf16.gmra.mrb[0].mxu0 %v525
        %v564 = vpop.f32.mrb[0].mxu0
        %v565 = vadd.f32 %v521, %v564
        %v566 = vpop.f32.mrb[0].mxu0
        %v567 = vpop.f32.mrb[0].mxu0
        %v568 = vpop.f32.mrb[0].mxu0
        %569 = vdwg.mxu0
        %v570 = vsel %vm523, %v565, -inf
        %571 = vmax.xlane.f32.xlu0 %v570
        %v572 = vpop.xlane.xlu0 %571
        %v573 = vsub.f32 %v565, %v572
        %v574 = vmul.f32 %v573, 1.442695
        %v575 = vpow.pop %v574
        %v576 = vsel %vm523, %v575, 0.0
        %577 = vadd.xlane.f32.xlu0 %v576
        %v578 = vpop.xlane.xlu0 %577
        %v579 = vpack.c.bf16 %v575, %v575
        %v581 = vsel %vm523, %v579, 0
        %vm583 = vcmask 1043456
        %v585 = vsel %vm583, %v516, 0
        %587 = vmatprep.subr.bf16.mxu0 0
        %588 = vmatpush1.bf16.msra.mxu0 %v585
        %589 = vmatprep.subr.bf16.mxu0 0
        %590 = vmatpush1.bf16.msra.mxu0 0
        %591 = vmatprep.subr.bf16.mxu0 0
        %592 = vmatpush1.bf16.msra.mxu0 0
        %593 = vmatprep.subr.bf16.mxu0 0
        %594 = vmatpush1.bf16.msra.mxu0 0
        %595 = vmatprep.subr.bf16.mxu0 0
        %596 = vmatpush1.bf16.msra.mxu0 0
        %597 = vmatprep.subr.bf16.mxu0 0
        %598 = vmatpush1.bf16.msra.mxu0 0
        %599 = vmatprep.subr.bf16.mxu0 0
        %600 = vmatpush1.bf16.msra.mxu0 0
        %601 = vmatprep.subr.bf16.mxu0 0
        %602 = vmatpush1.bf16.msra.mxu0 0
        %603 = vmatprep.subr.bf16.mxu0 0
        %604 = vmatpush1.bf16.msra.mxu0 0
        %605 = vmatprep.subr.bf16.mxu0 0
        %606 = vmatpush1.bf16.msra.mxu0 0
        %607 = vmatprep.subr.bf16.mxu0 0
        %608 = vmatpush1.bf16.msra.mxu0 0
        %609 = vmatprep.subr.bf16.mxu0 0
        %610 = vmatpush1.bf16.msra.mxu0 0
        %611 = vmatprep.subr.bf16.mxu0 0
        %612 = vmatpush1.bf16.msra.mxu0 0
        %613 = vmatprep.subr.bf16.mxu0 0
        %614 = vmatpush1.bf16.msra.mxu0 0
        %615 = vmatprep.subr.bf16.mxu0 0
        %616 = vmatpush1.bf16.msra.mxu0 0
        %617 = vmatprep.subr.bf16.mxu0 0
        %618 = vmatpush1.bf16.msra.mxu0 0
        %619 = vmatprep.mubr.bf16.mxu0 0
        %620 = vmatmul.mubr.bf16.gmra.mrb[0].mxu0 %v581
        %v621 = vpop.f32.mrb[0].mxu0
        %v622 = vadd.f32 0.0, %v621
        %v623 = vpop.f32.mrb[0].mxu0
        %v624 = vpop.f32.mrb[0].mxu0
        %v625 = vpop.f32.mrb[0].mxu0
        %626 = vdwg.mxu0
        %v627 = vrcp.pop %v578
        %v628 = vmul.f32 %v622, %v627
        %s629 = scalar_lea.vmem [#allocation2], 4
        %v630 = vld [vmem:[%s629] sm:$0xf]
        %s631 = scalar_lea.vmem [#allocation2], 20
        %v632 = vld [vmem:[%s631] sm:$0xf]
        %634 = vrot.lane.b32.xlu0 %v512, 120
        %v635 = vpop.permute.xlu0 %634
        %v637 = vsel %vm523, %v635, 0
        %v640 = vsel %vm523, %v630, 0
        %642 = vmatprep.subr.bf16.mxu0 0
        %643 = vmatpush1.bf16.xpose.msra.mxu0 %v640
        %644 = vmatprep.subr.bf16.mxu0 0
        %645 = vmatpush1.bf16.xpose.msra.mxu0 0
        %646 = vmatprep.subr.bf16.mxu0 0
        %647 = vmatpush1.bf16.xpose.msra.mxu0 0
        %648 = vmatprep.subr.bf16.mxu0 0
        %649 = vmatpush1.bf16.xpose.msra.mxu0 0
        %650 = vmatprep.subr.bf16.mxu0 0
        %651 = vmatpush1.bf16.xpose.msra.mxu0 0
        %652 = vmatprep.subr.bf16.mxu0 0
        %653 = vmatpush1.bf16.xpose.msra.mxu0 0
        %654 = vmatprep.subr.bf16.mxu0 0
        %655 = vmatpush1.bf16.xpose.msra.mxu0 0
        %656 = vmatprep.subr.bf16.mxu0 0
        %657 = vmatpush1.bf16.xpose.msra.mxu0 0
        %658 = vmatprep.subr.bf16.mxu0 0
        %659 = vmatpush1.bf16.xpose.msra.mxu0 0
        %660 = vmatprep.subr.bf16.mxu0 0
        %661 = vmatpush1.bf16.xpose.msra.mxu0 0
        %662 = vmatprep.subr.bf16.mxu0 0
        %663 = vmatpush1.bf16.xpose.msra.mxu0 0
        %664 = vmatprep.subr.bf16.mxu0 0
        %665 = vmatpush1.bf16.xpose.msra.mxu0 0
        %666 = vmatprep.subr.bf16.mxu0 0
        %667 = vmatpush1.bf16.xpose.msra.mxu0 0
        %668 = vmatprep.subr.bf16.mxu0 0
        %669 = vmatpush1.bf16.xpose.msra.mxu0 0
        %670 = vmatprep.subr.bf16.mxu0 0
        %671 = vmatpush1.bf16.xpose.msra.mxu0 0
        %672 = vmatprep.subr.bf16.mxu0 0
        %673 = vmatpush1.bf16.xpose.msra.mxu0 0
        %674 = vmatprep.mubr.bf16.mxu0 0
        %675 = vmatmul.mubr.bf16.gmra.mrb[0].mxu0 %v637
        %v676 = vpop.f32.mrb[0].mxu0
        %v677 = vadd.f32 %v521, %v676
        %v678 = vpop.f32.mrb[0].mxu0
        %v679 = vpop.f32.mrb[0].mxu0
        %v680 = vpop.f32.mrb[0].mxu0
        %681 = vdwg.mxu0
        %v682 = vsel %vm523, %v677, -inf
        %683 = vmax.xlane.f32.xlu0 %v682
        %v684 = vpop.xlane.xlu0 %683
        %v685 = vsub.f32 %v677, %v684
        %v686 = vmul.f32 %v685, 1.442695
        %v687 = vpow.pop %v686
        %v688 = vsel %vm523, %v687, 0.0
        %689 = vadd.xlane.f32.xlu0 %v688
        %v690 = vpop.xlane.xlu0 %689
        %v691 = vpack.c.bf16 %v687, %v687
        %v693 = vsel %vm523, %v691, 0
        %v696 = vsel %vm583, %v632, 0
        %698 = vmatprep.subr.bf16.mxu0 0
        %699 = vmatpush1.bf16.msra.mxu0 %v696
        %700 = vmatprep.subr.bf16.mxu0 0
        %701 = vmatpush1.bf16.msra.mxu0 0
        %702 = vmatprep.subr.bf16.mxu0 0
        %703 = vmatpush1.bf16.msra.mxu0 0
        %704 = vmatprep.subr.bf16.mxu0 0
        %705 = vmatpush1.bf16.msra.mxu0 0
        %706 = vmatprep.subr.bf16.mxu0 0
        %707 = vmatpush1.bf16.msra.mxu0 0
        %708 = vmatprep.subr.bf16.mxu0 0
        %709 = vmatpush1.bf16.msra.mxu0 0
        %710 = vmatprep.subr.bf16.mxu0 0
        %711 = vmatpush1.bf16.msra.mxu0 0
        %712 = vmatprep.subr.bf16.mxu0 0
        %713 = vmatpush1.bf16.msra.mxu0 0
        %714 = vmatprep.subr.bf16.mxu0 0
        %715 = vmatpush1.bf16.msra.mxu0 0
        %716 = vmatprep.subr.bf16.mxu0 0
        %717 = vmatpush1.bf16.msra.mxu0 0
        %718 = vmatprep.subr.bf16.mxu0 0
        %719 = vmatpush1.bf16.msra.mxu0 0
        %720 = vmatprep.subr.bf16.mxu0 0
        %721 = vmatpush1.bf16.msra.mxu0 0
        %722 = vmatprep.subr.bf16.mxu0 0
        %723 = vmatpush1.bf16.msra.mxu0 0
        %724 = vmatprep.subr.bf16.mxu0 0
        %725 = vmatpush1.bf16.msra.mxu0 0
        %726 = vmatprep.subr.bf16.mxu0 0
        %727 = vmatpush1.bf16.msra.mxu0 0
        %728 = vmatprep.subr.bf16.mxu0 0
        %729 = vmatpush1.bf16.msra.mxu0 0
        %730 = vmatprep.mubr.bf16.mxu0 0
        %731 = vmatmul.mubr.bf16.gmra.mrb[0].mxu0 %v693
        %v732 = vpop.f32.mrb[0].mxu0
        %v733 = vadd.f32 0.0, %v732
        %v734 = vpop.f32.mrb[0].mxu0
        %v735 = vpop.f32.mrb[0].mxu0
        %v736 = vpop.f32.mrb[0].mxu0
        %737 = vdwg.mxu0
        %v738 = vrcp.pop %v690
        %v739 = vmul.f32 %v733, %v738
        %s740 = scalar_lea.vmem [#allocation2], 8
        %v741 = vld [vmem:[%s740] sm:$0xf]
        %s742 = scalar_lea.vmem [#allocation2], 24
        %v743 = vld [vmem:[%s742] sm:$0xf]
        %744 = vrot.lane.b32.xlu0 %v512, 112
        %v745 = vpop.permute.xlu0 %744
        %v747 = vsel %vm523, %v745, 0
        %v750 = vsel %vm523, %v741, 0
        %752 = vmatprep.subr.bf16.mxu0 0
        %753 = vmatpush1.bf16.xpose.msra.mxu0 %v750
        %754 = vmatprep.subr.bf16.mxu0 0
        %755 = vmatpush1.bf16.xpose.msra.mxu0 0
        %756 = vmatprep.subr.bf16.mxu0 0
        %757 = vmatpush1.bf16.xpose.msra.mxu0 0
        %758 = vmatprep.subr.bf16.mxu0 0
        %759 = vmatpush1.bf16.xpose.msra.mxu0 0
        %760 = vmatprep.subr.bf16.mxu0 0
        %761 = vmatpush1.bf16.xpose.msra.mxu0 0
        %762 = vmatprep.subr.bf16.mxu0 0
        %763 = vmatpush1.bf16.xpose.msra.mxu0 0
        %764 = vmatprep.subr.bf16.mxu0 0
        %765 = vmatpush1.bf16.xpose.msra.mxu0 0
        %766 = vmatprep.subr.bf16.mxu0 0
        %767 = vmatpush1.bf16.xpose.msra.mxu0 0
        %768 = vmatprep.subr.bf16.mxu0 0
        %769 = vmatpush1.bf16.xpose.msra.mxu0 0
        %770 = vmatprep.subr.bf16.mxu0 0
        %771 = vmatpush1.bf16.xpose.msra.mxu0 0
        %772 = vmatprep.subr.bf16.mxu0 0
        %773 = vmatpush1.bf16.xpose.msra.mxu0 0
        %774 = vmatprep.subr.bf16.mxu0 0
        %775 = vmatpush1.bf16.xpose.msra.mxu0 0
        %776 = vmatprep.subr.bf16.mxu0 0
        %777 = vmatpush1.bf16.xpose.msra.mxu0 0
        %778 = vmatprep.subr.bf16.mxu0 0
        %779 = vmatpush1.bf16.xpose.msra.mxu0 0
        %780 = vmatprep.subr.bf16.mxu0 0
        %781 = vmatpush1.bf16.xpose.msra.mxu0 0
        %782 = vmatprep.subr.bf16.mxu0 0
        %783 = vmatpush1.bf16.xpose.msra.mxu0 0
        %784 = vmatprep.mubr.bf16.mxu0 0
        %785 = vmatmul.mubr.bf16.gmra.mrb[0].mxu0 %v747
        %v786 = vpop.f32.mrb[0].mxu0
        %v787 = vadd.f32 %v521, %v786
        %v788 = vpop.f32.mrb[0].mxu0
        %v789 = vpop.f32.mrb[0].mxu0
        %v790 = vpop.f32.mrb[0].mxu0
        %791 = vdwg.mxu0
        %v792 = vsel %vm523, %v787, -inf
        %793 = vmax.xlane.f32.xlu0 %v792
        %v794 = vpop.xlane.xlu0 %793
        %v795 = vsub.f32 %v787, %v794
        %v796 = vmul.f32 %v795, 1.442695
        %v797 = vpow.pop %v796
        %v798 = vsel %vm523, %v797, 0.0
        %799 = vadd.xlane.f32.xlu0 %v798
        %v800 = vpop.xlane.xlu0 %799
        %v801 = vpack.c.bf16 %v797, %v797
        %v803 = vsel %vm523, %v801, 0
        %v806 = vsel %vm583, %v743, 0
        %808 = vmatprep.subr.bf16.mxu0 0
        %809 = vmatpush1.bf16.msra.mxu0 %v806
        %810 = vmatprep.subr.bf16.mxu0 0
        %811 = vmatpush1.bf16.msra.mxu0 0
        %812 = vmatprep.subr.bf16.mxu0 0
        %813 = vmatpush1.bf16.msra.mxu0 0
        %814 = vmatprep.subr.bf16.mxu0 0
        %815 = vmatpush1.bf16.msra.mxu0 0
        %816 = vmatprep.subr.bf16.mxu0 0
        %817 = vmatpush1.bf16.msra.mxu0 0
        %818 = vmatprep.subr.bf16.mxu0 0
        %819 = vmatpush1.bf16.msra.mxu0 0
        %820 = vmatprep.subr.bf16.mxu0 0
        %821 = vmatpush1.bf16.msra.mxu0 0
        %822 = vmatprep.subr.bf16.mxu0 0
        %823 = vmatpush1.bf16.msra.mxu0 0
        %824 = vmatprep.subr.bf16.mxu0 0
        %825 = vmatpush1.bf16.msra.mxu0 0
        %826 = vmatprep.subr.bf16.mxu0 0
        %827 = vmatpush1.bf16.msra.mxu0 0
        %828 = vmatprep.subr.bf16.mxu0 0
        %829 = vmatpush1.bf16.msra.mxu0 0
        %830 = vmatprep.subr.bf16.mxu0 0
        %831 = vmatpush1.bf16.msra.mxu0 0
        %832 = vmatprep.subr.bf16.mxu0 0
        %833 = vmatpush1.bf16.msra.mxu0 0
        %834 = vmatprep.subr.bf16.mxu0 0
        %835 = vmatpush1.bf16.msra.mxu0 0
        %836 = vmatprep.subr.bf16.mxu0 0
        %837 = vmatpush1.bf16.msra.mxu0 0
        %838 = vmatprep.subr.bf16.mxu0 0
        %839 = vmatpush1.bf16.msra.mxu0 0
        %840 = vmatprep.mubr.bf16.mxu0 0
        %841 = vmatmul.mubr.bf16.gmra.mrb[0].mxu0 %v803
        %v842 = vpop.f32.mrb[0].mxu0
        %v843 = vadd.f32 0.0, %v842
        %v844 = vpop.f32.mrb[0].mxu0
        %v845 = vpop.f32.mrb[0].mxu0
        %v846 = vpop.f32.mrb[0].mxu0
        %847 = vdwg.mxu0
        %v848 = vrcp.pop %v800
        %v849 = vmul.f32 %v843, %v848
        %s850 = scalar_lea.vmem [#allocation2], 12
        %v851 = vld [vmem:[%s850] sm:$0xf]
        %s852 = scalar_lea.vmem [#allocation2], 28
        %v853 = vld [vmem:[%s852] sm:$0xf]
        %854 = vrot.lane.b32.xlu0 %v512, 104
        %v855 = vpop.permute.xlu0 %854
        %v857 = vsel %vm523, %v855, 0
        %v860 = vsel %vm523, %v851, 0
        %862 = vmatprep.subr.bf16.mxu0 0
        %863 = vmatpush1.bf16.xpose.msra.mxu0 %v860
        %864 = vmatprep.subr.bf16.mxu0 0
        %865 = vmatpush1.bf16.xpose.msra.mxu0 0
        %866 = vmatprep.subr.bf16.mxu0 0
        %867 = vmatpush1.bf16.xpose.msra.mxu0 0
        %868 = vmatprep.subr.bf16.mxu0 0
        %869 = vmatpush1.bf16.xpose.msra.mxu0 0
        %870 = vmatprep.subr.bf16.mxu0 0
        %871 = vmatpush1.bf16.xpose.msra.mxu0 0
        %872 = vmatprep.subr.bf16.mxu0 0
        %873 = vmatpush1.bf16.xpose.msra.mxu0 0
        %874 = vmatprep.subr.bf16.mxu0 0
        %875 = vmatpush1.bf16.xpose.msra.mxu0 0
        %876 = vmatprep.subr.bf16.mxu0 0
        %877 = vmatpush1.bf16.xpose.msra.mxu0 0
        %878 = vmatprep.subr.bf16.mxu0 0
        %879 = vmatpush1.bf16.xpose.msra.mxu0 0
        %880 = vmatprep.subr.bf16.mxu0 0
        %881 = vmatpush1.bf16.xpose.msra.mxu0 0
        %882 = vmatprep.subr.bf16.mxu0 0
        %883 = vmatpush1.bf16.xpose.msra.mxu0 0
        %884 = vmatprep.subr.bf16.mxu0 0
        %885 = vmatpush1.bf16.xpose.msra.mxu0 0
        %886 = vmatprep.subr.bf16.mxu0 0
        %887 = vmatpush1.bf16.xpose.msra.mxu0 0
        %888 = vmatprep.subr.bf16.mxu0 0
        %889 = vmatpush1.bf16.xpose.msra.mxu0 0
        %890 = vmatprep.subr.bf16.mxu0 0
        %891 = vmatpush1.bf16.xpose.msra.mxu0 0
        %892 = vmatprep.subr.bf16.mxu0 0
        %893 = vmatpush1.bf16.xpose.msra.mxu0 0
        %894 = vmatprep.mubr.bf16.mxu0 0
        %895 = vmatmul.mubr.bf16.gmra.mrb[0].mxu0 %v857
        %v896 = vpop.f32.mrb[0].mxu0
        %v897 = vadd.f32 %v521, %v896
        %v898 = vpop.f32.mrb[0].mxu0
        %v899 = vpop.f32.mrb[0].mxu0
        %v900 = vpop.f32.mrb[0].mxu0
        %901 = vdwg.mxu0
        %v902 = vsel %vm523, %v897, -inf
        %903 = vmax.xlane.f32.xlu0 %v902
        %v904 = vpop.xlane.xlu0 %903
        %v905 = vsub.f32 %v897, %v904
        %v906 = vmul.f32 %v905, 1.442695
        %v907 = vpow.pop %v906
        %v908 = vsel %vm523, %v907, 0.0
        %909 = vadd.xlane.f32.xlu0 %v908
        %v910 = vpop.xlane.xlu0 %909
        %v911 = vpack.c.bf16 %v907, %v907
        %v913 = vsel %vm523, %v911, 0
        %v916 = vsel %vm583, %v853, 0
        %918 = vmatprep.subr.bf16.mxu0 0
        %919 = vmatpush1.bf16.msra.mxu0 %v916
        %920 = vmatprep.subr.bf16.mxu0 0
        %921 = vmatpush1.bf16.msra.mxu0 0
        %922 = vmatprep.subr.bf16.mxu0 0
        %923 = vmatpush1.bf16.msra.mxu0 0
        %924 = vmatprep.subr.bf16.mxu0 0
        %925 = vmatpush1.bf16.msra.mxu0 0
        %926 = vmatprep.subr.bf16.mxu0 0
        %927 = vmatpush1.bf16.msra.mxu0 0
        %928 = vmatprep.subr.bf16.mxu0 0
        %929 = vmatpush1.bf16.msra.mxu0 0
        %930 = vmatprep.subr.bf16.mxu0 0
        %931 = vmatpush1.bf16.msra.mxu0 0
        %932 = vmatprep.subr.bf16.mxu0 0
        %933 = vmatpush1.bf16.msra.mxu0 0
        %934 = vmatprep.subr.bf16.mxu0 0
        %935 = vmatpush1.bf16.msra.mxu0 0
        %936 = vmatprep.subr.bf16.mxu0 0
        %937 = vmatpush1.bf16.msra.mxu0 0
        %938 = vmatprep.subr.bf16.mxu0 0
        %939 = vmatpush1.bf16.msra.mxu0 0
        %940 = vmatprep.subr.bf16.mxu0 0
        %941 = vmatpush1.bf16.msra.mxu0 0
        %942 = vmatprep.subr.bf16.mxu0 0
        %943 = vmatpush1.bf16.msra.mxu0 0
        %944 = vmatprep.subr.bf16.mxu0 0
        %945 = vmatpush1.bf16.msra.mxu0 0
        %946 = vmatprep.subr.bf16.mxu0 0
        %947 = vmatpush1.bf16.msra.mxu0 0
        %948 = vmatprep.subr.bf16.mxu0 0
        %949 = vmatpush1.bf16.msra.mxu0 0
        %950 = vmatprep.mubr.bf16.mxu0 0
        %951 = vmatmul.mubr.bf16.gmra.mrb[0].mxu0 %v913
        %v952 = vpop.f32.mrb[0].mxu0
        %v953 = vadd.f32 0.0, %v952
        %v954 = vpop.f32.mrb[0].mxu0
        %v955 = vpop.f32.mrb[0].mxu0
        %v956 = vpop.f32.mrb[0].mxu0
        %957 = vdwg.mxu0
        %v958 = vrcp.pop %v910
        %v959 = vmul.f32 %v953, %v958
        %961 = vrot.lane.b32.xlu0 %v739, 8
        %v962 = vpop.permute.xlu0 %961
        %965 = vrot.lane.b32.xlu0 %v849, 16
        %v966 = vpop.permute.xlu0 %965
        %969 = vrot.lane.b32.xlu0 %v959, 24
        %v970 = vpop.permute.xlu0 %969
        %v972 = vsel %vm523, %v628, %v962
        %vm973 = vcmask 130048
        %v974 = vsel %vm973, %v972, %v966
        %vm975 = vcmask 195584
        %v976 = vsel %vm975, %v974, %v970
        %977 = vst.msk [vmem:[%s320] sm:$0xff] %vm467, %v976
        %s978 = sand.u32 %s182, 1
        %s979 = scalar_lea.sflag [#allocation5], %s978
        %s980 = sand.u32 %s182, 1
        %s981 = smul.addr %s980, 8
        %s982 = scalar_lea.vmem [#allocation9], %s981
        // Predicated region
        $region61: #{tpu_custom_call.1} parent=43 // pred_check
          %p983 = pneg %p192
        $region62: #{tpu_custom_call.1} parent=43 // pred_check_branch
          %985 = sbr.rel (%p983) target = $region64
        $region63: #{tpu_custom_call.1} parent=43 // pred_region
          %s987 = ssub.s32 128, 128
          %988 = vsyncadd %s979, %s987
          %s989 = sadd.s32 %s29, %s28
          %s990 = smul.addr %s989, 128
          %s991 = scalar_lea.hbm %s6, %s990
          %s993 = sshll.u32 %s982, 4
          %s994 = int_to_ptr.vmem [resolvable:$true] %s993
          %996 = dma.vmem_to_hbm [thread:$0]  %s994, 128, %s991, %s979
        $region64: #{tpu_custom_call.1} parent=43 // pred_fallthru
          _
      $region44: #{tpu_custom_call.1} parent=5 // pred_fallthru
        _
      %p997 = scmp.le.s32.totalorder 2, %s19
      // Predicated region
      $region65: #{tpu_custom_call.1} parent=5 // pred_check
        %p998 = pneg %p997
      $region66: #{tpu_custom_call.1} parent=5 // pred_check_branch
        %1000 = sbr.rel (%p998) target = $region68
      $region67: #{tpu_custom_call.1} parent=5 // pred_region
        %s1001 = ssub.s32 %s19, 2
        // Predicated region
        $region69: #{tpu_custom_call.1} parent=67 // pred_check
          %p1002 = pneg %p198
        $region70: #{tpu_custom_call.1} parent=67 // pred_check_branch
          %1004 = sbr.rel (%p1002) target = $region72
        $region71: #{tpu_custom_call.1} parent=67 // pred_region
          %s1005 = sand.u32 %s183, 1
          %s1006 = scalar_lea.sflag [#allocation5], %s1005
          %s1007 = sand.u32 %s183, 1
          %s1008 = smul.addr %s1007, 8
          %s1009 = scalar_lea.vmem [#allocation9], %s1008
          %1010 = dma.done %s1006, 128
        $region72: #{tpu_custom_call.1} parent=67 // pred_fallthru
          _
      $region68: #{tpu_custom_call.1} parent=5 // pred_fallthru
        _
    $region6: #{tpu_custom_call.1} parent=1 // loop_footer
      %s23 = sadd.s32 1, %s19
    $region7: #{tpu_custom_call.1} parent=1 // loop_footer_branch
      %18 = sbr.rel target = $region3
    $region8: #{tpu_custom_call.1} parent=1 // loop_exit
      _
    %1011 = vsyncpa [#allocation4], 1
    %s1012 = scalar_lea.sflag [#allocation4], 1
    %1013 = vsyncpa %s1012, 1
    %1014 = vsyncpa [#allocation7], 1
    %1015 = vsyncpa [#allocation5], 1
    %s1016 = scalar_lea.sflag [#allocation5], 1
    %1017 = vsyncpa %s1016, 1

</llo_original>
